<compile_context>
chip_gen: v5e
topology: v5e:2x2
jax: 0.10.0
libtpu: 0.0.40
codegen_flags: <defaults>
</compile_context>

<pallas_src>
import functools

import jax
import jax.numpy as jnp
from jax import lax
from jax.experimental import pallas as pl
from jax.experimental.pallas import tpu as pltpu


# ----------------------------- Pallas kernel ------------------------------ #
def _qst_lstm_fc_kernel(num_layers, hidden_size, seq_len, batch_pad,
                        emb_ref, *refs):
    """refs = [wih_0, whh_0, b_0, ..., wih_{L-1}, whh_{L-1}, b_{L-1},
               fc_w, fc_b, out_ref, h_buf(scratch), xp_buf(scratch)]"""
    n_w = 3 * num_layers
    layer_w = refs[:n_w]
    fc_w_ref = refs[n_w]        # (2*L*H, embed) bf16, rows = [h_0,c_0,h_1,...]
    fc_b_ref = refs[n_w + 1]    # (1, embed) f32
    out_ref = refs[n_w + 2]     # (B, embed)
    h_buf = refs[n_w + 3]       # (S*B, H)  f32: hidden sequence -> next layer
    xp_buf = refs[n_w + 4]      # (S*B, 4H) f32: hoisted input projection

    H = hidden_size
    S = seq_len
    B = batch_pad

    # Lane mask selecting the "g" gate block (lanes [2H, 3H)). Hoisted once.
    lane = lax.broadcasted_iota(jnp.int32, (B, 4 * H), 1)
    g_mask = (lane >= 2 * H) & (lane < 3 * H)

    feats = []
    for l in range(num_layers):
        wih_ref = layer_w[3 * l]        # (in_dim, 4H) bf16 (g cols pre-scaled x2)
        whh_ref = layer_w[3 * l + 1]    # (H, 4H)      bf16 (g cols pre-scaled x2)
        b_ref = layer_w[3 * l + 2]      # (1, 4H)      f32  (g cols pre-scaled x2)

        # ---- Hoisted input projection for ALL timesteps (one MXU matmul). ----
        if l == 0:
            x_all = jnp.tanh(emb_ref[...].astype(jnp.float32))     # (S*B, E)
        else:
            x_all = h_buf[...]                                     # (S*B, H)
        xp_buf[...] = (jnp.dot(x_all.astype(jnp.bfloat16), wih_ref[...],
                               preferred_element_type=jnp.float32)
                       + b_ref[...])

        whh = whh_ref[...]              # resident across the recurrence
        write_h = l < num_layers - 1

        def step(t, carry, whh=whh, write_h=write_h):
            h, c = carry
            row = pl.multiple_of(t * B, B)
            gates = (xp_buf[pl.ds(row, B), :]
                     + jnp.dot(h.astype(jnp.bfloat16), whh,
                               preferred_element_type=jnp.float32))  # (B, 4H)
            s = jax.nn.sigmoid(gates)                    # full-vreg EUP pass
            acts = jnp.where(g_mask, 2.0 * s - 1.0, s)   # tanh(g) = 2*sig(2g)-1
            i = acts[:, 0:H]
            f = acts[:, H:2 * H]
            g = acts[:, 2 * H:3 * H]
            o = acts[:, 3 * H:4 * H]
            c_new = f * c + i * g
            h_new = o * jnp.tanh(c_new)
            if write_h:
                h_buf[pl.ds(row, B), :] = h_new          # feeds next layer
            return (h_new, c_new)

        h0 = jnp.zeros((B, H), jnp.float32)
        c0 = jnp.zeros((B, H), jnp.float32)
        h_last, c_last = lax.fori_loop(0, S, step, (h0, c0), unroll=True)
        # PyTorch feature layout per batch row: [h_0, c_0, h_1, c_1, ...]
        feats.append(h_last)
        feats.append(c_last)

    # Final projection without a lane-interleaved concat: accumulate per-block
    # dots against the matching fc_w row blocks (row order matches the
    # [h_0, c_0, h_1, c_1, ...] interleave).
    acc = jnp.broadcast_to(fc_b_ref[...], out_ref.shape).astype(jnp.float32)
    for k, fk in enumerate(feats):
        acc = acc + jnp.dot(jnp.tanh(fk).astype(jnp.bfloat16),
                            fc_w_ref[k * H:(k + 1) * H, :],
                            preferred_element_type=jnp.float32)
    out_ref[...] = acc.astype(out_ref.dtype)


# ------------------------------- wrapper ----------------------------------- #
def qst_encoder_forward(question, params, *, num_layers, hidden_size,
                        embed_size):
    """question: (B, S) int32 token ids."""
    B, S = question.shape
    H = hidden_size
    B_pad = max(8, ((B + 7) // 8) * 8)      # sublane-dense batch

    # Glue: embedding gather + time-major layout + batch pad (pure XLA).
    emb = jnp.take(params["embedding"], question, axis=0)          # (B, S, E)
    E = emb.shape[-1]
    emb = jnp.transpose(emb, (1, 0, 2)).astype(jnp.float32)        # (S, B, E)
    emb = jnp.pad(emb, ((0, 0), (0, B_pad - B), (0, 0)))
    emb = emb.reshape(S * B_pad, E)                                # row t*B+b

    # Pre-scale the g-gate columns by 2 so the kernel can use a single
    # full-vreg sigmoid + masked select instead of per-gate slicing for tanh.
    gate_scale = jnp.concatenate([
        jnp.ones((2 * H,), jnp.float32),
        2.0 * jnp.ones((H,), jnp.float32),
        jnp.ones((H,), jnp.float32)])

    inputs = [emb]
    for l in range(num_layers):
        wih = jnp.transpose(params[f"wih_{l}"]) * gate_scale       # (in, 4H)
        whh = jnp.transpose(params[f"whh_{l}"]) * gate_scale       # (H, 4H)
        b = ((params[f"bih_{l}"] + params[f"bhh_{l}"]) * gate_scale)[None, :]
        inputs += [wih.astype(jnp.bfloat16), whh.astype(jnp.bfloat16),
                   b.astype(jnp.float32)]
    inputs.append(jnp.transpose(params["fc_w"]).astype(jnp.bfloat16))  # (2LH,emb)
    inputs.append(params["fc_b"][None, :].astype(jnp.float32))         # (1, emb)

    kernel = functools.partial(_qst_lstm_fc_kernel, num_layers, hidden_size,
                               S, B_pad)

    out = pl.pallas_call(
        kernel,
        out_shape=jax.ShapeDtypeStruct((B_pad, embed_size), jnp.float32),
        in_specs=[pl.BlockSpec(memory_space=pltpu.MemorySpace.VMEM)]
        * len(inputs),
        out_specs=pl.BlockSpec(memory_space=pltpu.MemorySpace.VMEM),
        scratch_shapes=[
            pltpu.VMEM((S * B_pad, H), jnp.float32),       # inter-layer hidden
            pltpu.VMEM((S * B_pad, 4 * H), jnp.float32),   # hoisted input proj
        ],
        # Explicit VMEM budget (safe on v5e/v6e/v7x at these sizes; re-derive
        # and tile over S for large problems on v7x's 64 MiB VMEM).
        compiler_params=pltpu.CompilerParams(
            vmem_limit_bytes=32 * 1024 * 1024),
    )(*inputs)
    return out[:B]


# --------------------------- pure-JAX reference ---------------------------- #
def qst_encoder_reference(question, params, *, num_layers, hidden_size):
    H = hidden_size
    emb = jnp.take(params["embedding"], question, axis=0)
    x = jnp.transpose(jnp.tanh(emb), (1, 0, 2))                    # (S, B, E)
    B = x.shape[1]
    feats = []
    layer_in = x
    for l in range(num_layers):
        wih = params[f"wih_{l}"]
        whh = params[f"whh_{l}"]
        b = params[f"bih_{l}"] + params[f"bhh_{l}"]

        def step(carry, x_t, wih=wih, whh=whh, b=b):
            h, c = carry
            gates = x_t @ wih.T + h @ whh.T + b
            i = jax.nn.sigmoid(gates[:, 0:H])
            f = jax.nn.sigmoid(gates[:, H:2 * H])
            g = jnp.tanh(gates[:, 2 * H:3 * H])
            o = jax.nn.sigmoid(gates[:, 3 * H:4 * H])
            c_new = f * c + i * g
            h_new = o * jnp.tanh(c_new)
            return (h_new, c_new), h_new

        (h_last, c_last), outs = lax.scan(
            step, (jnp.zeros((B, H)), jnp.zeros((B, H))), layer_in)
        feats += [h_last, c_last]
        layer_in = outs
    feat = jnp.tanh(jnp.concatenate(feats, axis=-1))
    return feat @ params["fc_w"].T + params["fc_b"]


# --------------------------------- main ------------------------------------ #
if __name__ == "__main__":
    qst_vocab_size = 50
    word_embed_size = 32
    embed_size = 32
    num_layers = 2
    hidden_size = 32
    B, S = 2, 8

    key = jax.random.PRNGKey(0)
    keys = iter(jax.random.split(key, 4 + 4 * num_layers + 2))

    params = {
        "embedding": 0.1 * jax.random.normal(
            next(keys), (qst_vocab_size, word_embed_size), jnp.float32),
        "fc_w": 0.1 * jax.random.normal(
            next(keys), (embed_size, 2 * num_layers * hidden_size),
            jnp.float32),
        "fc_b": 0.1 * jax.random.normal(next(keys), (embed_size,), jnp.float32),
    }
    for l in range(num_layers):
        in_dim = word_embed_size if l == 0 else hidden_size
        params[f"wih_{l}"] = 0.1 * jax.random.normal(
            next(keys), (4 * hidden_size, in_dim), jnp.float32)
        params[f"whh_{l}"] = 0.1 * jax.random.normal(
            next(keys), (4 * hidden_size, hidden_size), jnp.float32)
        params[f"bih_{l}"] = 0.1 * jax.random.normal(
            next(keys), (4 * hidden_size,), jnp.float32)
        params[f"bhh_{l}"] = 0.1 * jax.random.normal(
            next(keys), (4 * hidden_size,), jnp.float32)

    question = jax.random.randint(next(keys), (B, S), 0, qst_vocab_size,
                                  dtype=jnp.int32)

    fwd = jax.jit(functools.partial(
        qst_encoder_forward, num_layers=num_layers, hidden_size=hidden_size,
        embed_size=embed_size))
    out = jax.block_until_ready(fwd(question, params))

    ref = qst_encoder_reference(question, params, num_layers=num_layers,
                                hidden_size=hidden_size)
    assert out.shape == (B, embed_size)
    # bf16 MXU operands with f32 accumulation: comfortably within 1e-2.
    assert jnp.allclose(out, ref, atol=1e-2, rtol=1e-2), "mismatch vs reference"

    print("KERNEL_OK")
</pallas_src>

<mosaic_0001>
module attributes {stable_mosaic.version = 11 : i64} {
  func.func @_qst_lstm_fc_kernel(%arg0: memref<64x32xf32, #tpu.memory_space<vmem>>, %arg1: memref<32x128xbf16, #tpu.memory_space<vmem>>, %arg2: memref<32x128xbf16, #tpu.memory_space<vmem>>, %arg3: memref<1x128xf32, #tpu.memory_space<vmem>>, %arg4: memref<32x128xbf16, #tpu.memory_space<vmem>>, %arg5: memref<32x128xbf16, #tpu.memory_space<vmem>>, %arg6: memref<1x128xf32, #tpu.memory_space<vmem>>, %arg7: memref<128x32xbf16, #tpu.memory_space<vmem>>, %arg8: memref<1x32xf32, #tpu.memory_space<vmem>>, %arg9: memref<8x32xf32, #tpu.memory_space<vmem>>, %arg10: memref<64x32xf32, #tpu.memory_space<vmem>>, %arg11: memref<64x128xf32, #tpu.memory_space<vmem>>) attributes {dimension_semantics = [], scalar_prefetch = 0 : i64, scratch_operands = 2 : i64, tpu.core_type = #tpu.core_type<tc>} {
    %0 = tpu.iota {dimensions = array<i32: 1>} : vector<8x128xi32>
    %c64_i32 = arith.constant 64 : i32
    %1 = vector.broadcast %c64_i32 : i32 to vector<8x128xi32>
    %2 = arith.cmpi sge, %0, %1 : vector<8x128xi32>
    %c96_i32 = arith.constant 96 : i32
    %3 = vector.broadcast %c96_i32 : i32 to vector<8x128xi32>
    %4 = arith.cmpi slt, %0, %3 : vector<8x128xi32>
    %5 = arith.andi %2, %4 : vector<8x128xi1>
    %c0 = arith.constant 0 : index
    %c0_0 = arith.constant 0 : index
    %6 = vector.load %arg0[%c0, %c0_0] : memref<64x32xf32, #tpu.memory_space<vmem>>, vector<64x32xf32>
    %7 = math.tanh %6 : vector<64x32xf32>
    %8 = arith.truncf %7 : vector<64x32xf32> to vector<64x32xbf16>
    %c0_1 = arith.constant 0 : index
    %c0_2 = arith.constant 0 : index
    %9 = vector.load %arg1[%c0_1, %c0_2] : memref<32x128xbf16, #tpu.memory_space<vmem>>, vector<32x128xbf16>
    %cst = arith.constant dense<0.000000e+00> : vector<64x128xf32>
    %10 = tpu.matmul %8, %9, %cst {dimension_numbers = #tpu.dot_dimension_numbers<[1], [0], [0], [1], [0, 0, 1, 1], [], []>} : vector<64x32xbf16>, vector<32x128xbf16>, vector<64x128xf32> -> vector<64x128xf32>
    %c0_3 = arith.constant 0 : index
    %c0_4 = arith.constant 0 : index
    %11 = vector.load %arg3[%c0_3, %c0_4] : memref<1x128xf32, #tpu.memory_space<vmem>>, vector<1x128xf32>
    %12 = vector.broadcast %11 : vector<1x128xf32> to vector<64x128xf32>
    %13 = arith.addf %10, %12 : vector<64x128xf32>
    %c0_5 = arith.constant 0 : index
    %c0_6 = arith.constant 0 : index
    %14 = vector.load %arg11[%c0_5, %c0_6] : memref<64x128xf32, #tpu.memory_space<vmem>>, vector<64x128xf32>
    tpu.vector_store %arg11[%c0_5, %c0_6], %13 {strides = array<i32>} : memref<64x128xf32, #tpu.memory_space<vmem>>, vector<64x128xf32>,
    %c0_7 = arith.constant 0 : index
    %c0_8 = arith.constant 0 : index
    %15 = vector.load %arg2[%c0_7, %c0_8] : memref<32x128xbf16, #tpu.memory_space<vmem>>, vector<32x128xbf16>
    %cst_9 = arith.constant 0.000000e+00 : f32
    %16 = vector.broadcast %cst_9 : f32 to vector<8x32xf32>
    %cst_10 = arith.constant 0.000000e+00 : f32
    %17 = vector.broadcast %cst_10 : f32 to vector<8x32xf32>
    %c0_i32 = arith.constant 0 : i32
    %c8_i32 = arith.constant 8 : i32
    %18 = arith.muli %c0_i32, %c8_i32 : i32
    %19 = tpu.assume_multiple %18, 8 : i32
    %20 = arith.index_cast %19 : i32 to index
    %c0_11 = arith.constant 0 : index
    %21 = vector.load %arg11[%20, %c0_11] : memref<64x128xf32, #tpu.memory_space<vmem>>, vector<8x128xf32>
    %22 = arith.truncf %16 : vector<8x32xf32> to vector<8x32xbf16>
    %cst_12 = arith.constant dense<0.000000e+00> : vector<8x128xf32>
    %23 = tpu.matmul %22, %15, %cst_12 {dimension_numbers = #tpu.dot_dimension_numbers<[1], [0], [0], [1], [0, 0, 1, 1], [], []>} : vector<8x32xbf16>, vector<32x128xbf16>, vector<8x128xf32> -> vector<8x128xf32>
    %24 = arith.addf %21, %23 : vector<8x128xf32>
    %25 = arith.negf %24 : vector<8x128xf32>
    %26 = math.exp %25 : vector<8x128xf32>
    %cst_13 = arith.constant 1.000000e+00 : f32
    %27 = vector.broadcast %cst_13 : f32 to vector<8x128xf32>
    %28 = arith.addf %27, %26 : vector<8x128xf32>
    %29 = arith.divf %27, %28 : vector<8x128xf32>
    %cst_14 = arith.constant 2.000000e+00 : f32
    %30 = vector.broadcast %cst_14 : f32 to vector<8x128xf32>
    %31 = arith.mulf %30, %29 : vector<8x128xf32>
    %cst_15 = arith.constant 1.000000e+00 : f32
    %32 = vector.broadcast %cst_15 : f32 to vector<8x128xf32>
    %33 = arith.subf %31, %32 : vector<8x128xf32>
    %34 = arith.select %5, %33, %29 : vector<8x128xi1>, vector<8x128xf32>
    %35 = vector.extract_strided_slice %34 {offsets = [0, 0], sizes = [8, 32], strides = [1, 1]} : vector<8x128xf32> to vector<8x32xf32>
    %36 = vector.extract_strided_slice %34 {offsets = [0, 32], sizes = [8, 32], strides = [1, 1]} : vector<8x128xf32> to vector<8x32xf32>
    %37 = vector.extract_strided_slice %34 {offsets = [0, 64], sizes = [8, 32], strides = [1, 1]} : vector<8x128xf32> to vector<8x32xf32>
    %38 = vector.extract_strided_slice %34 {offsets = [0, 96], sizes = [8, 32], strides = [1, 1]} : vector<8x128xf32> to vector<8x32xf32>
    %39 = arith.mulf %36, %17 : vector<8x32xf32>
    %40 = arith.mulf %35, %37 : vector<8x32xf32>
    %41 = arith.addf %39, %40 : vector<8x32xf32>
    %42 = math.tanh %41 : vector<8x32xf32>
    %43 = arith.mulf %38, %42 : vector<8x32xf32>
    %44 = arith.index_cast %19 : i32 to index
    %c0_16 = arith.constant 0 : index
    %45 = vector.load %arg10[%44, %c0_16] : memref<64x32xf32, #tpu.memory_space<vmem>>, vector<8x32xf32>
    tpu.vector_store %arg10[%44, %c0_16], %43 {strides = array<i32>} : memref<64x32xf32, #tpu.memory_space<vmem>>, vector<8x32xf32>,
    %c1_i32 = arith.constant 1 : i32
    %c8_i32_17 = arith.constant 8 : i32
    %46 = arith.muli %c1_i32, %c8_i32_17 : i32
    %47 = tpu.assume_multiple %46, 8 : i32
    %48 = arith.index_cast %47 : i32 to index
    %c0_18 = arith.constant 0 : index
    %49 = vector.load %arg11[%48, %c0_18] : memref<64x128xf32, #tpu.memory_space<vmem>>, vector<8x128xf32>
    %50 = arith.truncf %43 : vector<8x32xf32> to vector<8x32xbf16>
    %cst_19 = arith.constant dense<0.000000e+00> : vector<8x128xf32>
    %51 = tpu.matmul %50, %15, %cst_19 {dimension_numbers = #tpu.dot_dimension_numbers<[1], [0], [0], [1], [0, 0, 1, 1], [], []>} : vector<8x32xbf16>, vector<32x128xbf16>, vector<8x128xf32> -> vector<8x128xf32>
    %52 = arith.addf %49, %51 : vector<8x128xf32>
    %53 = arith.negf %52 : vector<8x128xf32>
    %54 = math.exp %53 : vector<8x128xf32>
    %cst_20 = arith.constant 1.000000e+00 : f32
    %55 = vector.broadcast %cst_20 : f32 to vector<8x128xf32>
    %56 = arith.addf %55, %54 : vector<8x128xf32>
    %57 = arith.divf %55, %56 : vector<8x128xf32>
    %cst_21 = arith.constant 2.000000e+00 : f32
    %58 = vector.broadcast %cst_21 : f32 to vector<8x128xf32>
    %59 = arith.mulf %58, %57 : vector<8x128xf32>
    %cst_22 = arith.constant 1.000000e+00 : f32
    %60 = vector.broadcast %cst_22 : f32 to vector<8x128xf32>
    %61 = arith.subf %59, %60 : vector<8x128xf32>
    %62 = arith.select %5, %61, %57 : vector<8x128xi1>, vector<8x128xf32>
    %63 = vector.extract_strided_slice %62 {offsets = [0, 0], sizes = [8, 32], strides = [1, 1]} : vector<8x128xf32> to vector<8x32xf32>
    %64 = vector.extract_strided_slice %62 {offsets = [0, 32], sizes = [8, 32], strides = [1, 1]} : vector<8x128xf32> to vector<8x32xf32>
    %65 = vector.extract_strided_slice %62 {offsets = [0, 64], sizes = [8, 32], strides = [1, 1]} : vector<8x128xf32> to vector<8x32xf32>
    %66 = vector.extract_strided_slice %62 {offsets = [0, 96], sizes = [8, 32], strides = [1, 1]} : vector<8x128xf32> to vector<8x32xf32>
    %67 = arith.mulf %64, %41 : vector<8x32xf32>
    %68 = arith.mulf %63, %65 : vector<8x32xf32>
    %69 = arith.addf %67, %68 : vector<8x32xf32>
    %70 = math.tanh %69 : vector<8x32xf32>
    %71 = arith.mulf %66, %70 : vector<8x32xf32>
    %72 = arith.index_cast %47 : i32 to index
    %c0_23 = arith.constant 0 : index
    %73 = vector.load %arg10[%72, %c0_23] : memref<64x32xf32, #tpu.memory_space<vmem>>, vector<8x32xf32>
    tpu.vector_store %arg10[%72, %c0_23], %71 {strides = array<i32>} : memref<64x32xf32, #tpu.memory_space<vmem>>, vector<8x32xf32>,
    %c2_i32 = arith.constant 2 : i32
    %c8_i32_24 = arith.constant 8 : i32
    %74 = arith.muli %c2_i32, %c8_i32_24 : i32
    %75 = tpu.assume_multiple %74, 8 : i32
    %76 = arith.index_cast %75 : i32 to index
    %c0_25 = arith.constant 0 : index
    %77 = vector.load %arg11[%76, %c0_25] : memref<64x128xf32, #tpu.memory_space<vmem>>, vector<8x128xf32>
    %78 = arith.truncf %71 : vector<8x32xf32> to vector<8x32xbf16>
    %cst_26 = arith.constant dense<0.000000e+00> : vector<8x128xf32>
    %79 = tpu.matmul %78, %15, %cst_26 {dimension_numbers = #tpu.dot_dimension_numbers<[1], [0], [0], [1], [0, 0, 1, 1], [], []>} : vector<8x32xbf16>, vector<32x128xbf16>, vector<8x128xf32> -> vector<8x128xf32>
    %80 = arith.addf %77, %79 : vector<8x128xf32>
    %81 = arith.negf %80 : vector<8x128xf32>
    %82 = math.exp %81 : vector<8x128xf32>
    %cst_27 = arith.constant 1.000000e+00 : f32
    %83 = vector.broadcast %cst_27 : f32 to vector<8x128xf32>
    %84 = arith.addf %83, %82 : vector<8x128xf32>
    %85 = arith.divf %83, %84 : vector<8x128xf32>
    %cst_28 = arith.constant 2.000000e+00 : f32
    %86 = vector.broadcast %cst_28 : f32 to vector<8x128xf32>
    %87 = arith.mulf %86, %85 : vector<8x128xf32>
    %cst_29 = arith.constant 1.000000e+00 : f32
    %88 = vector.broadcast %cst_29 : f32 to vector<8x128xf32>
    %89 = arith.subf %87, %88 : vector<8x128xf32>
    %90 = arith.select %5, %89, %85 : vector<8x128xi1>, vector<8x128xf32>
    %91 = vector.extract_strided_slice %90 {offsets = [0, 0], sizes = [8, 32], strides = [1, 1]} : vector<8x128xf32> to vector<8x32xf32>
    %92 = vector.extract_strided_slice %90 {offsets = [0, 32], sizes = [8, 32], strides = [1, 1]} : vector<8x128xf32> to vector<8x32xf32>
    %93 = vector.extract_strided_slice %90 {offsets = [0, 64], sizes = [8, 32], strides = [1, 1]} : vector<8x128xf32> to vector<8x32xf32>
    %94 = vector.extract_strided_slice %90 {offsets = [0, 96], sizes = [8, 32], strides = [1, 1]} : vector<8x128xf32> to vector<8x32xf32>
    %95 = arith.mulf %92, %69 : vector<8x32xf32>
    %96 = arith.mulf %91, %93 : vector<8x32xf32>
    %97 = arith.addf %95, %96 : vector<8x32xf32>
    %98 = math.tanh %97 : vector<8x32xf32>
    %99 = arith.mulf %94, %98 : vector<8x32xf32>
    %100 = arith.index_cast %75 : i32 to index
    %c0_30 = arith.constant 0 : index
    %101 = vector.load %arg10[%100, %c0_30] : memref<64x32xf32, #tpu.memory_space<vmem>>, vector<8x32xf32>
    tpu.vector_store %arg10[%100, %c0_30], %99 {strides = array<i32>} : memref<64x32xf32, #tpu.memory_space<vmem>>, vector<8x32xf32>,
    %c3_i32 = arith.constant 3 : i32
    %c8_i32_31 = arith.constant 8 : i32
    %102 = arith.muli %c3_i32, %c8_i32_31 : i32
    %103 = tpu.assume_multiple %102, 8 : i32
    %104 = arith.index_cast %103 : i32 to index
    %c0_32 = arith.constant 0 : index
    %105 = vector.load %arg11[%104, %c0_32] : memref<64x128xf32, #tpu.memory_space<vmem>>, vector<8x128xf32>
    %106 = arith.truncf %99 : vector<8x32xf32> to vector<8x32xbf16>
    %cst_33 = arith.constant dense<0.000000e+00> : vector<8x128xf32>
    %107 = tpu.matmul %106, %15, %cst_33 {dimension_numbers = #tpu.dot_dimension_numbers<[1], [0], [0], [1], [0, 0, 1, 1], [], []>} : vector<8x32xbf16>, vector<32x128xbf16>, vector<8x128xf32> -> vector<8x128xf32>
    %108 = arith.addf %105, %107 : vector<8x128xf32>
    %109 = arith.negf %108 : vector<8x128xf32>
    %110 = math.exp %109 : vector<8x128xf32>
    %cst_34 = arith.constant 1.000000e+00 : f32
    %111 = vector.broadcast %cst_34 : f32 to vector<8x128xf32>
    %112 = arith.addf %111, %110 : vector<8x128xf32>
    %113 = arith.divf %111, %112 : vector<8x128xf32>
    %cst_35 = arith.constant 2.000000e+00 : f32
    %114 = vector.broadcast %cst_35 : f32 to vector<8x128xf32>
    %115 = arith.mulf %114, %113 : vector<8x128xf32>
    %cst_36 = arith.constant 1.000000e+00 : f32
    %116 = vector.broadcast %cst_36 : f32 to vector<8x128xf32>
    %117 = arith.subf %115, %116 : vector<8x128xf32>
    %118 = arith.select %5, %117, %113 : vector<8x128xi1>, vector<8x128xf32>
    %119 = vector.extract_strided_slice %118 {offsets = [0, 0], sizes = [8, 32], strides = [1, 1]} : vector<8x128xf32> to vector<8x32xf32>
    %120 = vector.extract_strided_slice %118 {offsets = [0, 32], sizes = [8, 32], strides = [1, 1]} : vector<8x128xf32> to vector<8x32xf32>
    %121 = vector.extract_strided_slice %118 {offsets = [0, 64], sizes = [8, 32], strides = [1, 1]} : vector<8x128xf32> to vector<8x32xf32>
    %122 = vector.extract_strided_slice %118 {offsets = [0, 96], sizes = [8, 32], strides = [1, 1]} : vector<8x128xf32> to vector<8x32xf32>
    %123 = arith.mulf %120, %97 : vector<8x32xf32>
    %124 = arith.mulf %119, %121 : vector<8x32xf32>
    %125 = arith.addf %123, %124 : vector<8x32xf32>
    %126 = math.tanh %125 : vector<8x32xf32>
    %127 = arith.mulf %122, %126 : vector<8x32xf32>
    %128 = arith.index_cast %103 : i32 to index
    %c0_37 = arith.constant 0 : index
    %129 = vector.load %arg10[%128, %c0_37] : memref<64x32xf32, #tpu.memory_space<vmem>>, vector<8x32xf32>
    tpu.vector_store %arg10[%128, %c0_37], %127 {strides = array<i32>} : memref<64x32xf32, #tpu.memory_space<vmem>>, vector<8x32xf32>,
    %c4_i32 = arith.constant 4 : i32
    %c8_i32_38 = arith.constant 8 : i32
    %130 = arith.muli %c4_i32, %c8_i32_38 : i32
    %131 = tpu.assume_multiple %130, 8 : i32
    %132 = arith.index_cast %131 : i32 to index
    %c0_39 = arith.constant 0 : index
    %133 = vector.load %arg11[%132, %c0_39] : memref<64x128xf32, #tpu.memory_space<vmem>>, vector<8x128xf32>
    %134 = arith.truncf %127 : vector<8x32xf32> to vector<8x32xbf16>
    %cst_40 = arith.constant dense<0.000000e+00> : vector<8x128xf32>
    %135 = tpu.matmul %134, %15, %cst_40 {dimension_numbers = #tpu.dot_dimension_numbers<[1], [0], [0], [1], [0, 0, 1, 1], [], []>} : vector<8x32xbf16>, vector<32x128xbf16>, vector<8x128xf32> -> vector<8x128xf32>
    %136 = arith.addf %133, %135 : vector<8x128xf32>
    %137 = arith.negf %136 : vector<8x128xf32>
    %138 = math.exp %137 : vector<8x128xf32>
    %cst_41 = arith.constant 1.000000e+00 : f32
    %139 = vector.broadcast %cst_41 : f32 to vector<8x128xf32>
    %140 = arith.addf %139, %138 : vector<8x128xf32>
    %141 = arith.divf %139, %140 : vector<8x128xf32>
    %cst_42 = arith.constant 2.000000e+00 : f32
    %142 = vector.broadcast %cst_42 : f32 to vector<8x128xf32>
    %143 = arith.mulf %142, %141 : vector<8x128xf32>
    %cst_43 = arith.constant 1.000000e+00 : f32
    %144 = vector.broadcast %cst_43 : f32 to vector<8x128xf32>
    %145 = arith.subf %143, %144 : vector<8x128xf32>
    %146 = arith.select %5, %145, %141 : vector<8x128xi1>, vector<8x128xf32>
    %147 = vector.extract_strided_slice %146 {offsets = [0, 0], sizes = [8, 32], strides = [1, 1]} : vector<8x128xf32> to vector<8x32xf32>
    %148 = vector.extract_strided_slice %146 {offsets = [0, 32], sizes = [8, 32], strides = [1, 1]} : vector<8x128xf32> to vector<8x32xf32>
    %149 = vector.extract_strided_slice %146 {offsets = [0, 64], sizes = [8, 32], strides = [1, 1]} : vector<8x128xf32> to vector<8x32xf32>
    %150 = vector.extract_strided_slice %146 {offsets = [0, 96], sizes = [8, 32], strides = [1, 1]} : vector<8x128xf32> to vector<8x32xf32>
    %151 = arith.mulf %148, %125 : vector<8x32xf32>
    %152 = arith.mulf %147, %149 : vector<8x32xf32>
    %153 = arith.addf %151, %152 : vector<8x32xf32>
    %154 = math.tanh %153 : vector<8x32xf32>
    %155 = arith.mulf %150, %154 : vector<8x32xf32>
    %156 = arith.index_cast %131 : i32 to index
    %c0_44 = arith.constant 0 : index
    %157 = vector.load %arg10[%156, %c0_44] : memref<64x32xf32, #tpu.memory_space<vmem>>, vector<8x32xf32>
    tpu.vector_store %arg10[%156, %c0_44], %155 {strides = array<i32>} : memref<64x32xf32, #tpu.memory_space<vmem>>, vector<8x32xf32>,
    %c5_i32 = arith.constant 5 : i32
    %c8_i32_45 = arith.constant 8 : i32
    %158 = arith.muli %c5_i32, %c8_i32_45 : i32
    %159 = tpu.assume_multiple %158, 8 : i32
    %160 = arith.index_cast %159 : i32 to index
    %c0_46 = arith.constant 0 : index
    %161 = vector.load %arg11[%160, %c0_46] : memref<64x128xf32, #tpu.memory_space<vmem>>, vector<8x128xf32>
    %162 = arith.truncf %155 : vector<8x32xf32> to vector<8x32xbf16>
    %cst_47 = arith.constant dense<0.000000e+00> : vector<8x128xf32>
    %163 = tpu.matmul %162, %15, %cst_47 {dimension_numbers = #tpu.dot_dimension_numbers<[1], [0], [0], [1], [0, 0, 1, 1], [], []>} : vector<8x32xbf16>, vector<32x128xbf16>, vector<8x128xf32> -> vector<8x128xf32>
    %164 = arith.addf %161, %163 : vector<8x128xf32>
    %165 = arith.negf %164 : vector<8x128xf32>
    %166 = math.exp %165 : vector<8x128xf32>
    %cst_48 = arith.constant 1.000000e+00 : f32
    %167 = vector.broadcast %cst_48 : f32 to vector<8x128xf32>
    %168 = arith.addf %167, %166 : vector<8x128xf32>
    %169 = arith.divf %167, %168 : vector<8x128xf32>
    %cst_49 = arith.constant 2.000000e+00 : f32
    %170 = vector.broadcast %cst_49 : f32 to vector<8x128xf32>
    %171 = arith.mulf %170, %169 : vector<8x128xf32>
    %cst_50 = arith.constant 1.000000e+00 : f32
    %172 = vector.broadcast %cst_50 : f32 to vector<8x128xf32>
    %173 = arith.subf %171, %172 : vector<8x128xf32>
    %174 = arith.select %5, %173, %169 : vector<8x128xi1>, vector<8x128xf32>
    %175 = vector.extract_strided_slice %174 {offsets = [0, 0], sizes = [8, 32], strides = [1, 1]} : vector<8x128xf32> to vector<8x32xf32>
    %176 = vector.extract_strided_slice %174 {offsets = [0, 32], sizes = [8, 32], strides = [1, 1]} : vector<8x128xf32> to vector<8x32xf32>
    %177 = vector.extract_strided_slice %174 {offsets = [0, 64], sizes = [8, 32], strides = [1, 1]} : vector<8x128xf32> to vector<8x32xf32>
    %178 = vector.extract_strided_slice %174 {offsets = [0, 96], sizes = [8, 32], strides = [1, 1]} : vector<8x128xf32> to vector<8x32xf32>
    %179 = arith.mulf %176, %153 : vector<8x32xf32>
    %180 = arith.mulf %175, %177 : vector<8x32xf32>
    %181 = arith.addf %179, %180 : vector<8x32xf32>
    %182 = math.tanh %181 : vector<8x32xf32>
    %183 = arith.mulf %178, %182 : vector<8x32xf32>
    %184 = arith.index_cast %159 : i32 to index
    %c0_51 = arith.constant 0 : index
    %185 = vector.load %arg10[%184, %c0_51] : memref<64x32xf32, #tpu.memory_space<vmem>>, vector<8x32xf32>
    tpu.vector_store %arg10[%184, %c0_51], %183 {strides = array<i32>} : memref<64x32xf32, #tpu.memory_space<vmem>>, vector<8x32xf32>,
    %c6_i32 = arith.constant 6 : i32
    %c8_i32_52 = arith.constant 8 : i32
    %186 = arith.muli %c6_i32, %c8_i32_52 : i32
    %187 = tpu.assume_multiple %186, 8 : i32
    %188 = arith.index_cast %187 : i32 to index
    %c0_53 = arith.constant 0 : index
    %189 = vector.load %arg11[%188, %c0_53] : memref<64x128xf32, #tpu.memory_space<vmem>>, vector<8x128xf32>
    %190 = arith.truncf %183 : vector<8x32xf32> to vector<8x32xbf16>
    %cst_54 = arith.constant dense<0.000000e+00> : vector<8x128xf32>
    %191 = tpu.matmul %190, %15, %cst_54 {dimension_numbers = #tpu.dot_dimension_numbers<[1], [0], [0], [1], [0, 0, 1, 1], [], []>} : vector<8x32xbf16>, vector<32x128xbf16>, vector<8x128xf32> -> vector<8x128xf32>
    %192 = arith.addf %189, %191 : vector<8x128xf32>
    %193 = arith.negf %192 : vector<8x128xf32>
    %194 = math.exp %193 : vector<8x128xf32>
    %cst_55 = arith.constant 1.000000e+00 : f32
    %195 = vector.broadcast %cst_55 : f32 to vector<8x128xf32>
    %196 = arith.addf %195, %194 : vector<8x128xf32>
    %197 = arith.divf %195, %196 : vector<8x128xf32>
    %cst_56 = arith.constant 2.000000e+00 : f32
    %198 = vector.broadcast %cst_56 : f32 to vector<8x128xf32>
    %199 = arith.mulf %198, %197 : vector<8x128xf32>
    %cst_57 = arith.constant 1.000000e+00 : f32
    %200 = vector.broadcast %cst_57 : f32 to vector<8x128xf32>
    %201 = arith.subf %199, %200 : vector<8x128xf32>
    %202 = arith.select %5, %201, %197 : vector<8x128xi1>, vector<8x128xf32>
    %203 = vector.extract_strided_slice %202 {offsets = [0, 0], sizes = [8, 32], strides = [1, 1]} : vector<8x128xf32> to vector<8x32xf32>
    %204 = vector.extract_strided_slice %202 {offsets = [0, 32], sizes = [8, 32], strides = [1, 1]} : vector<8x128xf32> to vector<8x32xf32>
    %205 = vector.extract_strided_slice %202 {offsets = [0, 64], sizes = [8, 32], strides = [1, 1]} : vector<8x128xf32> to vector<8x32xf32>
    %206 = vector.extract_strided_slice %202 {offsets = [0, 96], sizes = [8, 32], strides = [1, 1]} : vector<8x128xf32> to vector<8x32xf32>
    %207 = arith.mulf %204, %181 : vector<8x32xf32>
    %208 = arith.mulf %203, %205 : vector<8x32xf32>
    %209 = arith.addf %207, %208 : vector<8x32xf32>
    %210 = math.tanh %209 : vector<8x32xf32>
    %211 = arith.mulf %206, %210 : vector<8x32xf32>
    %212 = arith.index_cast %187 : i32 to index
    %c0_58 = arith.constant 0 : index
    %213 = vector.load %arg10[%212, %c0_58] : memref<64x32xf32, #tpu.memory_space<vmem>>, vector<8x32xf32>
    tpu.vector_store %arg10[%212, %c0_58], %211 {strides = array<i32>} : memref<64x32xf32, #tpu.memory_space<vmem>>, vector<8x32xf32>,
    %c7_i32 = arith.constant 7 : i32
    %c8_i32_59 = arith.constant 8 : i32
    %214 = arith.muli %c7_i32, %c8_i32_59 : i32
    %215 = tpu.assume_multiple %214, 8 : i32
    %216 = arith.index_cast %215 : i32 to index
    %c0_60 = arith.constant 0 : index
    %217 = vector.load %arg11[%216, %c0_60] : memref<64x128xf32, #tpu.memory_space<vmem>>, vector<8x128xf32>
    %218 = arith.truncf %211 : vector<8x32xf32> to vector<8x32xbf16>
    %cst_61 = arith.constant dense<0.000000e+00> : vector<8x128xf32>
    %219 = tpu.matmul %218, %15, %cst_61 {dimension_numbers = #tpu.dot_dimension_numbers<[1], [0], [0], [1], [0, 0, 1, 1], [], []>} : vector<8x32xbf16>, vector<32x128xbf16>, vector<8x128xf32> -> vector<8x128xf32>
    %220 = arith.addf %217, %219 : vector<8x128xf32>
    %221 = arith.negf %220 : vector<8x128xf32>
    %222 = math.exp %221 : vector<8x128xf32>
    %cst_62 = arith.constant 1.000000e+00 : f32
    %223 = vector.broadcast %cst_62 : f32 to vector<8x128xf32>
    %224 = arith.addf %223, %222 : vector<8x128xf32>
    %225 = arith.divf %223, %224 : vector<8x128xf32>
    %cst_63 = arith.constant 2.000000e+00 : f32
    %226 = vector.broadcast %cst_63 : f32 to vector<8x128xf32>
    %227 = arith.mulf %226, %225 : vector<8x128xf32>
    %cst_64 = arith.constant 1.000000e+00 : f32
    %228 = vector.broadcast %cst_64 : f32 to vector<8x128xf32>
    %229 = arith.subf %227, %228 : vector<8x128xf32>
    %230 = arith.select %5, %229, %225 : vector<8x128xi1>, vector<8x128xf32>
    %231 = vector.extract_strided_slice %230 {offsets = [0, 0], sizes = [8, 32], strides = [1, 1]} : vector<8x128xf32> to vector<8x32xf32>
    %232 = vector.extract_strided_slice %230 {offsets = [0, 32], sizes = [8, 32], strides = [1, 1]} : vector<8x128xf32> to vector<8x32xf32>
    %233 = vector.extract_strided_slice %230 {offsets = [0, 64], sizes = [8, 32], strides = [1, 1]} : vector<8x128xf32> to vector<8x32xf32>
    %234 = vector.extract_strided_slice %230 {offsets = [0, 96], sizes = [8, 32], strides = [1, 1]} : vector<8x128xf32> to vector<8x32xf32>
    %235 = arith.mulf %232, %209 : vector<8x32xf32>
    %236 = arith.mulf %231, %233 : vector<8x32xf32>
    %237 = arith.addf %235, %236 : vector<8x32xf32>
    %238 = math.tanh %237 : vector<8x32xf32>
    %239 = arith.mulf %234, %238 : vector<8x32xf32>
    %240 = arith.index_cast %215 : i32 to index
    %c0_65 = arith.constant 0 : index
    %241 = vector.load %arg10[%240, %c0_65] : memref<64x32xf32, #tpu.memory_space<vmem>>, vector<8x32xf32>
    tpu.vector_store %arg10[%240, %c0_65], %239 {strides = array<i32>} : memref<64x32xf32, #tpu.memory_space<vmem>>, vector<8x32xf32>,
    %c8_i32_66 = arith.constant 8 : i32
    %c0_67 = arith.constant 0 : index
    %c0_68 = arith.constant 0 : index
    %242 = vector.load %arg10[%c0_67, %c0_68] : memref<64x32xf32, #tpu.memory_space<vmem>>, vector<64x32xf32>
    %243 = arith.truncf %242 : vector<64x32xf32> to vector<64x32xbf16>
    %c0_69 = arith.constant 0 : index
    %c0_70 = arith.constant 0 : index
    %244 = vector.load %arg4[%c0_69, %c0_70] : memref<32x128xbf16, #tpu.memory_space<vmem>>, vector<32x128xbf16>
    %cst_71 = arith.constant dense<0.000000e+00> : vector<64x128xf32>
    %245 = tpu.matmul %243, %244, %cst_71 {dimension_numbers = #tpu.dot_dimension_numbers<[1], [0], [0], [1], [0, 0, 1, 1], [], []>} : vector<64x32xbf16>, vector<32x128xbf16>, vector<64x128xf32> -> vector<64x128xf32>
    %c0_72 = arith.constant 0 : index
    %c0_73 = arith.constant 0 : index
    %246 = vector.load %arg6[%c0_72, %c0_73] : memref<1x128xf32, #tpu.memory_space<vmem>>, vector<1x128xf32>
    %247 = vector.broadcast %246 : vector<1x128xf32> to vector<64x128xf32>
    %248 = arith.addf %245, %247 : vector<64x128xf32>
    %c0_74 = arith.constant 0 : index
    %c0_75 = arith.constant 0 : index
    %249 = vector.load %arg11[%c0_74, %c0_75] : memref<64x128xf32, #tpu.memory_space<vmem>>, vector<64x128xf32>
    tpu.vector_store %arg11[%c0_74, %c0_75], %248 {strides = array<i32>} : memref<64x128xf32, #tpu.memory_space<vmem>>, vector<64x128xf32>,
    %c0_76 = arith.constant 0 : index
    %c0_77 = arith.constant 0 : index
    %250 = vector.load %arg5[%c0_76, %c0_77] : memref<32x128xbf16, #tpu.memory_space<vmem>>, vector<32x128xbf16>
    %cst_78 = arith.constant 0.000000e+00 : f32
    %251 = vector.broadcast %cst_78 : f32 to vector<8x32xf32>
    %cst_79 = arith.constant 0.000000e+00 : f32
    %252 = vector.broadcast %cst_79 : f32 to vector<8x32xf32>
    %c0_i32_80 = arith.constant 0 : i32
    %c8_i32_81 = arith.constant 8 : i32
    %253 = arith.muli %c0_i32_80, %c8_i32_81 : i32
    %254 = tpu.assume_multiple %253, 8 : i32
    %255 = arith.index_cast %254 : i32 to index
    %c0_82 = arith.constant 0 : index
    %256 = vector.load %arg11[%255, %c0_82] : memref<64x128xf32, #tpu.memory_space<vmem>>, vector<8x128xf32>
    %257 = arith.truncf %251 : vector<8x32xf32> to vector<8x32xbf16>
    %cst_83 = arith.constant dense<0.000000e+00> : vector<8x128xf32>
    %258 = tpu.matmul %257, %250, %cst_83 {dimension_numbers = #tpu.dot_dimension_numbers<[1], [0], [0], [1], [0, 0, 1, 1], [], []>} : vector<8x32xbf16>, vector<32x128xbf16>, vector<8x128xf32> -> vector<8x128xf32>
    %259 = arith.addf %256, %258 : vector<8x128xf32>
    %260 = arith.negf %259 : vector<8x128xf32>
    %261 = math.exp %260 : vector<8x128xf32>
    %cst_84 = arith.constant 1.000000e+00 : f32
    %262 = vector.broadcast %cst_84 : f32 to vector<8x128xf32>
    %263 = arith.addf %262, %261 : vector<8x128xf32>
    %264 = arith.divf %262, %263 : vector<8x128xf32>
    %cst_85 = arith.constant 2.000000e+00 : f32
    %265 = vector.broadcast %cst_85 : f32 to vector<8x128xf32>
    %266 = arith.mulf %265, %264 : vector<8x128xf32>
    %cst_86 = arith.constant 1.000000e+00 : f32
    %267 = vector.broadcast %cst_86 : f32 to vector<8x128xf32>
    %268 = arith.subf %266, %267 : vector<8x128xf32>
    %269 = arith.select %5, %268, %264 : vector<8x128xi1>, vector<8x128xf32>
    %270 = vector.extract_strided_slice %269 {offsets = [0, 0], sizes = [8, 32], strides = [1, 1]} : vector<8x128xf32> to vector<8x32xf32>
    %271 = vector.extract_strided_slice %269 {offsets = [0, 32], sizes = [8, 32], strides = [1, 1]} : vector<8x128xf32> to vector<8x32xf32>
    %272 = vector.extract_strided_slice %269 {offsets = [0, 64], sizes = [8, 32], strides = [1, 1]} : vector<8x128xf32> to vector<8x32xf32>
    %273 = vector.extract_strided_slice %269 {offsets = [0, 96], sizes = [8, 32], strides = [1, 1]} : vector<8x128xf32> to vector<8x32xf32>
    %274 = arith.mulf %271, %252 : vector<8x32xf32>
    %275 = arith.mulf %270, %272 : vector<8x32xf32>
    %276 = arith.addf %274, %275 : vector<8x32xf32>
    %277 = math.tanh %276 : vector<8x32xf32>
    %278 = arith.mulf %273, %277 : vector<8x32xf32>
    %c1_i32_87 = arith.constant 1 : i32
    %c8_i32_88 = arith.constant 8 : i32
    %279 = arith.muli %c1_i32_87, %c8_i32_88 : i32
    %280 = tpu.assume_multiple %279, 8 : i32
    %281 = arith.index_cast %280 : i32 to index
    %c0_89 = arith.constant 0 : index
    %282 = vector.load %arg11[%281, %c0_89] : memref<64x128xf32, #tpu.memory_space<vmem>>, vector<8x128xf32>
    %283 = arith.truncf %278 : vector<8x32xf32> to vector<8x32xbf16>
    %cst_90 = arith.constant dense<0.000000e+00> : vector<8x128xf32>
    %284 = tpu.matmul %283, %250, %cst_90 {dimension_numbers = #tpu.dot_dimension_numbers<[1], [0], [0], [1], [0, 0, 1, 1], [], []>} : vector<8x32xbf16>, vector<32x128xbf16>, vector<8x128xf32> -> vector<8x128xf32>
    %285 = arith.addf %282, %284 : vector<8x128xf32>
    %286 = arith.negf %285 : vector<8x128xf32>
    %287 = math.exp %286 : vector<8x128xf32>
    %cst_91 = arith.constant 1.000000e+00 : f32
    %288 = vector.broadcast %cst_91 : f32 to vector<8x128xf32>
    %289 = arith.addf %288, %287 : vector<8x128xf32>
    %290 = arith.divf %288, %289 : vector<8x128xf32>
    %cst_92 = arith.constant 2.000000e+00 : f32
    %291 = vector.broadcast %cst_92 : f32 to vector<8x128xf32>
    %292 = arith.mulf %291, %290 : vector<8x128xf32>
    %cst_93 = arith.constant 1.000000e+00 : f32
    %293 = vector.broadcast %cst_93 : f32 to vector<8x128xf32>
    %294 = arith.subf %292, %293 : vector<8x128xf32>
    %295 = arith.select %5, %294, %290 : vector<8x128xi1>, vector<8x128xf32>
    %296 = vector.extract_strided_slice %295 {offsets = [0, 0], sizes = [8, 32], strides = [1, 1]} : vector<8x128xf32> to vector<8x32xf32>
    %297 = vector.extract_strided_slice %295 {offsets = [0, 32], sizes = [8, 32], strides = [1, 1]} : vector<8x128xf32> to vector<8x32xf32>
    %298 = vector.extract_strided_slice %295 {offsets = [0, 64], sizes = [8, 32], strides = [1, 1]} : vector<8x128xf32> to vector<8x32xf32>
    %299 = vector.extract_strided_slice %295 {offsets = [0, 96], sizes = [8, 32], strides = [1, 1]} : vector<8x128xf32> to vector<8x32xf32>
    %300 = arith.mulf %297, %276 : vector<8x32xf32>
    %301 = arith.mulf %296, %298 : vector<8x32xf32>
    %302 = arith.addf %300, %301 : vector<8x32xf32>
    %303 = math.tanh %302 : vector<8x32xf32>
    %304 = arith.mulf %299, %303 : vector<8x32xf32>
    %c2_i32_94 = arith.constant 2 : i32
    %c8_i32_95 = arith.constant 8 : i32
    %305 = arith.muli %c2_i32_94, %c8_i32_95 : i32
    %306 = tpu.assume_multiple %305, 8 : i32
    %307 = arith.index_cast %306 : i32 to index
    %c0_96 = arith.constant 0 : index
    %308 = vector.load %arg11[%307, %c0_96] : memref<64x128xf32, #tpu.memory_space<vmem>>, vector<8x128xf32>
    %309 = arith.truncf %304 : vector<8x32xf32> to vector<8x32xbf16>
    %cst_97 = arith.constant dense<0.000000e+00> : vector<8x128xf32>
    %310 = tpu.matmul %309, %250, %cst_97 {dimension_numbers = #tpu.dot_dimension_numbers<[1], [0], [0], [1], [0, 0, 1, 1], [], []>} : vector<8x32xbf16>, vector<32x128xbf16>, vector<8x128xf32> -> vector<8x128xf32>
    %311 = arith.addf %308, %310 : vector<8x128xf32>
    %312 = arith.negf %311 : vector<8x128xf32>
    %313 = math.exp %312 : vector<8x128xf32>
    %cst_98 = arith.constant 1.000000e+00 : f32
    %314 = vector.broadcast %cst_98 : f32 to vector<8x128xf32>
    %315 = arith.addf %314, %313 : vector<8x128xf32>
    %316 = arith.divf %314, %315 : vector<8x128xf32>
    %cst_99 = arith.constant 2.000000e+00 : f32
    %317 = vector.broadcast %cst_99 : f32 to vector<8x128xf32>
    %318 = arith.mulf %317, %316 : vector<8x128xf32>
    %cst_100 = arith.constant 1.000000e+00 : f32
    %319 = vector.broadcast %cst_100 : f32 to vector<8x128xf32>
    %320 = arith.subf %318, %319 : vector<8x128xf32>
    %321 = arith.select %5, %320, %316 : vector<8x128xi1>, vector<8x128xf32>
    %322 = vector.extract_strided_slice %321 {offsets = [0, 0], sizes = [8, 32], strides = [1, 1]} : vector<8x128xf32> to vector<8x32xf32>
    %323 = vector.extract_strided_slice %321 {offsets = [0, 32], sizes = [8, 32], strides = [1, 1]} : vector<8x128xf32> to vector<8x32xf32>
    %324 = vector.extract_strided_slice %321 {offsets = [0, 64], sizes = [8, 32], strides = [1, 1]} : vector<8x128xf32> to vector<8x32xf32>
    %325 = vector.extract_strided_slice %321 {offsets = [0, 96], sizes = [8, 32], strides = [1, 1]} : vector<8x128xf32> to vector<8x32xf32>
    %326 = arith.mulf %323, %302 : vector<8x32xf32>
    %327 = arith.mulf %322, %324 : vector<8x32xf32>
    %328 = arith.addf %326, %327 : vector<8x32xf32>
    %329 = math.tanh %328 : vector<8x32xf32>
    %330 = arith.mulf %325, %329 : vector<8x32xf32>
    %c3_i32_101 = arith.constant 3 : i32
    %c8_i32_102 = arith.constant 8 : i32
    %331 = arith.muli %c3_i32_101, %c8_i32_102 : i32
    %332 = tpu.assume_multiple %331, 8 : i32
    %333 = arith.index_cast %332 : i32 to index
    %c0_103 = arith.constant 0 : index
    %334 = vector.load %arg11[%333, %c0_103] : memref<64x128xf32, #tpu.memory_space<vmem>>, vector<8x128xf32>
    %335 = arith.truncf %330 : vector<8x32xf32> to vector<8x32xbf16>
    %cst_104 = arith.constant dense<0.000000e+00> : vector<8x128xf32>
    %336 = tpu.matmul %335, %250, %cst_104 {dimension_numbers = #tpu.dot_dimension_numbers<[1], [0], [0], [1], [0, 0, 1, 1], [], []>} : vector<8x32xbf16>, vector<32x128xbf16>, vector<8x128xf32> -> vector<8x128xf32>
    %337 = arith.addf %334, %336 : vector<8x128xf32>
    %338 = arith.negf %337 : vector<8x128xf32>
    %339 = math.exp %338 : vector<8x128xf32>
    %cst_105 = arith.constant 1.000000e+00 : f32
    %340 = vector.broadcast %cst_105 : f32 to vector<8x128xf32>
    %341 = arith.addf %340, %339 : vector<8x128xf32>
    %342 = arith.divf %340, %341 : vector<8x128xf32>
    %cst_106 = arith.constant 2.000000e+00 : f32
    %343 = vector.broadcast %cst_106 : f32 to vector<8x128xf32>
    %344 = arith.mulf %343, %342 : vector<8x128xf32>
    %cst_107 = arith.constant 1.000000e+00 : f32
    %345 = vector.broadcast %cst_107 : f32 to vector<8x128xf32>
    %346 = arith.subf %344, %345 : vector<8x128xf32>
    %347 = arith.select %5, %346, %342 : vector<8x128xi1>, vector<8x128xf32>
    %348 = vector.extract_strided_slice %347 {offsets = [0, 0], sizes = [8, 32], strides = [1, 1]} : vector<8x128xf32> to vector<8x32xf32>
    %349 = vector.extract_strided_slice %347 {offsets = [0, 32], sizes = [8, 32], strides = [1, 1]} : vector<8x128xf32> to vector<8x32xf32>
    %350 = vector.extract_strided_slice %347 {offsets = [0, 64], sizes = [8, 32], strides = [1, 1]} : vector<8x128xf32> to vector<8x32xf32>
    %351 = vector.extract_strided_slice %347 {offsets = [0, 96], sizes = [8, 32], strides = [1, 1]} : vector<8x128xf32> to vector<8x32xf32>
    %352 = arith.mulf %349, %328 : vector<8x32xf32>
    %353 = arith.mulf %348, %350 : vector<8x32xf32>
    %354 = arith.addf %352, %353 : vector<8x32xf32>
    %355 = math.tanh %354 : vector<8x32xf32>
    %356 = arith.mulf %351, %355 : vector<8x32xf32>
    %c4_i32_108 = arith.constant 4 : i32
    %c8_i32_109 = arith.constant 8 : i32
    %357 = arith.muli %c4_i32_108, %c8_i32_109 : i32
    %358 = tpu.assume_multiple %357, 8 : i32
    %359 = arith.index_cast %358 : i32 to index
    %c0_110 = arith.constant 0 : index
    %360 = vector.load %arg11[%359, %c0_110] : memref<64x128xf32, #tpu.memory_space<vmem>>, vector<8x128xf32>
    %361 = arith.truncf %356 : vector<8x32xf32> to vector<8x32xbf16>
    %cst_111 = arith.constant dense<0.000000e+00> : vector<8x128xf32>
    %362 = tpu.matmul %361, %250, %cst_111 {dimension_numbers = #tpu.dot_dimension_numbers<[1], [0], [0], [1], [0, 0, 1, 1], [], []>} : vector<8x32xbf16>, vector<32x128xbf16>, vector<8x128xf32> -> vector<8x128xf32>
    %363 = arith.addf %360, %362 : vector<8x128xf32>
    %364 = arith.negf %363 : vector<8x128xf32>
    %365 = math.exp %364 : vector<8x128xf32>
    %cst_112 = arith.constant 1.000000e+00 : f32
    %366 = vector.broadcast %cst_112 : f32 to vector<8x128xf32>
    %367 = arith.addf %366, %365 : vector<8x128xf32>
    %368 = arith.divf %366, %367 : vector<8x128xf32>
    %cst_113 = arith.constant 2.000000e+00 : f32
    %369 = vector.broadcast %cst_113 : f32 to vector<8x128xf32>
    %370 = arith.mulf %369, %368 : vector<8x128xf32>
    %cst_114 = arith.constant 1.000000e+00 : f32
    %371 = vector.broadcast %cst_114 : f32 to vector<8x128xf32>
    %372 = arith.subf %370, %371 : vector<8x128xf32>
    %373 = arith.select %5, %372, %368 : vector<8x128xi1>, vector<8x128xf32>
    %374 = vector.extract_strided_slice %373 {offsets = [0, 0], sizes = [8, 32], strides = [1, 1]} : vector<8x128xf32> to vector<8x32xf32>
    %375 = vector.extract_strided_slice %373 {offsets = [0, 32], sizes = [8, 32], strides = [1, 1]} : vector<8x128xf32> to vector<8x32xf32>
    %376 = vector.extract_strided_slice %373 {offsets = [0, 64], sizes = [8, 32], strides = [1, 1]} : vector<8x128xf32> to vector<8x32xf32>
    %377 = vector.extract_strided_slice %373 {offsets = [0, 96], sizes = [8, 32], strides = [1, 1]} : vector<8x128xf32> to vector<8x32xf32>
    %378 = arith.mulf %375, %354 : vector<8x32xf32>
    %379 = arith.mulf %374, %376 : vector<8x32xf32>
    %380 = arith.addf %378, %379 : vector<8x32xf32>
    %381 = math.tanh %380 : vector<8x32xf32>
    %382 = arith.mulf %377, %381 : vector<8x32xf32>
    %c5_i32_115 = arith.constant 5 : i32
    %c8_i32_116 = arith.constant 8 : i32
    %383 = arith.muli %c5_i32_115, %c8_i32_116 : i32
    %384 = tpu.assume_multiple %383, 8 : i32
    %385 = arith.index_cast %384 : i32 to index
    %c0_117 = arith.constant 0 : index
    %386 = vector.load %arg11[%385, %c0_117] : memref<64x128xf32, #tpu.memory_space<vmem>>, vector<8x128xf32>
    %387 = arith.truncf %382 : vector<8x32xf32> to vector<8x32xbf16>
    %cst_118 = arith.constant dense<0.000000e+00> : vector<8x128xf32>
    %388 = tpu.matmul %387, %250, %cst_118 {dimension_numbers = #tpu.dot_dimension_numbers<[1], [0], [0], [1], [0, 0, 1, 1], [], []>} : vector<8x32xbf16>, vector<32x128xbf16>, vector<8x128xf32> -> vector<8x128xf32>
    %389 = arith.addf %386, %388 : vector<8x128xf32>
    %390 = arith.negf %389 : vector<8x128xf32>
    %391 = math.exp %390 : vector<8x128xf32>
    %cst_119 = arith.constant 1.000000e+00 : f32
    %392 = vector.broadcast %cst_119 : f32 to vector<8x128xf32>
    %393 = arith.addf %392, %391 : vector<8x128xf32>
    %394 = arith.divf %392, %393 : vector<8x128xf32>
    %cst_120 = arith.constant 2.000000e+00 : f32
    %395 = vector.broadcast %cst_120 : f32 to vector<8x128xf32>
    %396 = arith.mulf %395, %394 : vector<8x128xf32>
    %cst_121 = arith.constant 1.000000e+00 : f32
    %397 = vector.broadcast %cst_121 : f32 to vector<8x128xf32>
    %398 = arith.subf %396, %397 : vector<8x128xf32>
    %399 = arith.select %5, %398, %394 : vector<8x128xi1>, vector<8x128xf32>
    %400 = vector.extract_strided_slice %399 {offsets = [0, 0], sizes = [8, 32], strides = [1, 1]} : vector<8x128xf32> to vector<8x32xf32>
    %401 = vector.extract_strided_slice %399 {offsets = [0, 32], sizes = [8, 32], strides = [1, 1]} : vector<8x128xf32> to vector<8x32xf32>
    %402 = vector.extract_strided_slice %399 {offsets = [0, 64], sizes = [8, 32], strides = [1, 1]} : vector<8x128xf32> to vector<8x32xf32>
    %403 = vector.extract_strided_slice %399 {offsets = [0, 96], sizes = [8, 32], strides = [1, 1]} : vector<8x128xf32> to vector<8x32xf32>
    %404 = arith.mulf %401, %380 : vector<8x32xf32>
    %405 = arith.mulf %400, %402 : vector<8x32xf32>
    %406 = arith.addf %404, %405 : vector<8x32xf32>
    %407 = math.tanh %406 : vector<8x32xf32>
    %408 = arith.mulf %403, %407 : vector<8x32xf32>
    %c6_i32_122 = arith.constant 6 : i32
    %c8_i32_123 = arith.constant 8 : i32
    %409 = arith.muli %c6_i32_122, %c8_i32_123 : i32
    %410 = tpu.assume_multiple %409, 8 : i32
    %411 = arith.index_cast %410 : i32 to index
    %c0_124 = arith.constant 0 : index
    %412 = vector.load %arg11[%411, %c0_124] : memref<64x128xf32, #tpu.memory_space<vmem>>, vector<8x128xf32>
    %413 = arith.truncf %408 : vector<8x32xf32> to vector<8x32xbf16>
    %cst_125 = arith.constant dense<0.000000e+00> : vector<8x128xf32>
    %414 = tpu.matmul %413, %250, %cst_125 {dimension_numbers = #tpu.dot_dimension_numbers<[1], [0], [0], [1], [0, 0, 1, 1], [], []>} : vector<8x32xbf16>, vector<32x128xbf16>, vector<8x128xf32> -> vector<8x128xf32>
    %415 = arith.addf %412, %414 : vector<8x128xf32>
    %416 = arith.negf %415 : vector<8x128xf32>
    %417 = math.exp %416 : vector<8x128xf32>
    %cst_126 = arith.constant 1.000000e+00 : f32
    %418 = vector.broadcast %cst_126 : f32 to vector<8x128xf32>
    %419 = arith.addf %418, %417 : vector<8x128xf32>
    %420 = arith.divf %418, %419 : vector<8x128xf32>
    %cst_127 = arith.constant 2.000000e+00 : f32
    %421 = vector.broadcast %cst_127 : f32 to vector<8x128xf32>
    %422 = arith.mulf %421, %420 : vector<8x128xf32>
    %cst_128 = arith.constant 1.000000e+00 : f32
    %423 = vector.broadcast %cst_128 : f32 to vector<8x128xf32>
    %424 = arith.subf %422, %423 : vector<8x128xf32>
    %425 = arith.select %5, %424, %420 : vector<8x128xi1>, vector<8x128xf32>
    %426 = vector.extract_strided_slice %425 {offsets = [0, 0], sizes = [8, 32], strides = [1, 1]} : vector<8x128xf32> to vector<8x32xf32>
    %427 = vector.extract_strided_slice %425 {offsets = [0, 32], sizes = [8, 32], strides = [1, 1]} : vector<8x128xf32> to vector<8x32xf32>
    %428 = vector.extract_strided_slice %425 {offsets = [0, 64], sizes = [8, 32], strides = [1, 1]} : vector<8x128xf32> to vector<8x32xf32>
    %429 = vector.extract_strided_slice %425 {offsets = [0, 96], sizes = [8, 32], strides = [1, 1]} : vector<8x128xf32> to vector<8x32xf32>
    %430 = arith.mulf %427, %406 : vector<8x32xf32>
    %431 = arith.mulf %426, %428 : vector<8x32xf32>
    %432 = arith.addf %430, %431 : vector<8x32xf32>
    %433 = math.tanh %432 : vector<8x32xf32>
    %434 = arith.mulf %429, %433 : vector<8x32xf32>
    %c7_i32_129 = arith.constant 7 : i32
    %c8_i32_130 = arith.constant 8 : i32
    %435 = arith.muli %c7_i32_129, %c8_i32_130 : i32
    %436 = tpu.assume_multiple %435, 8 : i32
    %437 = arith.index_cast %436 : i32 to index
    %c0_131 = arith.constant 0 : index
    %438 = vector.load %arg11[%437, %c0_131] : memref<64x128xf32, #tpu.memory_space<vmem>>, vector<8x128xf32>
    %439 = arith.truncf %434 : vector<8x32xf32> to vector<8x32xbf16>
    %cst_132 = arith.constant dense<0.000000e+00> : vector<8x128xf32>
    %440 = tpu.matmul %439, %250, %cst_132 {dimension_numbers = #tpu.dot_dimension_numbers<[1], [0], [0], [1], [0, 0, 1, 1], [], []>} : vector<8x32xbf16>, vector<32x128xbf16>, vector<8x128xf32> -> vector<8x128xf32>
    %441 = arith.addf %438, %440 : vector<8x128xf32>
    %442 = arith.negf %441 : vector<8x128xf32>
    %443 = math.exp %442 : vector<8x128xf32>
    %cst_133 = arith.constant 1.000000e+00 : f32
    %444 = vector.broadcast %cst_133 : f32 to vector<8x128xf32>
    %445 = arith.addf %444, %443 : vector<8x128xf32>
    %446 = arith.divf %444, %445 : vector<8x128xf32>
    %cst_134 = arith.constant 2.000000e+00 : f32
    %447 = vector.broadcast %cst_134 : f32 to vector<8x128xf32>
    %448 = arith.mulf %447, %446 : vector<8x128xf32>
    %cst_135 = arith.constant 1.000000e+00 : f32
    %449 = vector.broadcast %cst_135 : f32 to vector<8x128xf32>
    %450 = arith.subf %448, %449 : vector<8x128xf32>
    %451 = arith.select %5, %450, %446 : vector<8x128xi1>, vector<8x128xf32>
    %452 = vector.extract_strided_slice %451 {offsets = [0, 0], sizes = [8, 32], strides = [1, 1]} : vector<8x128xf32> to vector<8x32xf32>
    %453 = vector.extract_strided_slice %451 {offsets = [0, 32], sizes = [8, 32], strides = [1, 1]} : vector<8x128xf32> to vector<8x32xf32>
    %454 = vector.extract_strided_slice %451 {offsets = [0, 64], sizes = [8, 32], strides = [1, 1]} : vector<8x128xf32> to vector<8x32xf32>
    %455 = vector.extract_strided_slice %451 {offsets = [0, 96], sizes = [8, 32], strides = [1, 1]} : vector<8x128xf32> to vector<8x32xf32>
    %456 = arith.mulf %453, %432 : vector<8x32xf32>
    %457 = arith.mulf %452, %454 : vector<8x32xf32>
    %458 = arith.addf %456, %457 : vector<8x32xf32>
    %459 = math.tanh %458 : vector<8x32xf32>
    %460 = arith.mulf %455, %459 : vector<8x32xf32>
    %c8_i32_136 = arith.constant 8 : i32
    %c0_137 = arith.constant 0 : index
    %c0_138 = arith.constant 0 : index
    %461 = vector.load %arg8[%c0_137, %c0_138] : memref<1x32xf32, #tpu.memory_space<vmem>>, vector<1x32xf32>
    %462 = vector.shape_cast %461 : vector<1x32xf32> to vector<1x32xf32>
    %463 = vector.broadcast %462 : vector<1x32xf32> to vector<8x32xf32>
    %464 = math.tanh %239 : vector<8x32xf32>
    %465 = arith.truncf %464 : vector<8x32xf32> to vector<8x32xbf16>
    %c0_139 = arith.constant 0 : index
    %c0_140 = arith.constant 0 : index
    %466 = vector.load %arg7[%c0_139, %c0_140] : memref<128x32xbf16, #tpu.memory_space<vmem>>, vector<32x32xbf16>
    %cst_141 = arith.constant dense<0.000000e+00> : vector<8x32xf32>
    %467 = tpu.matmul %465, %466, %cst_141 {dimension_numbers = #tpu.dot_dimension_numbers<[1], [0], [0], [1], [0, 0, 1, 1], [], []>} : vector<8x32xbf16>, vector<32x32xbf16>, vector<8x32xf32> -> vector<8x32xf32>
    %468 = arith.addf %463, %467 : vector<8x32xf32>
    %469 = math.tanh %237 : vector<8x32xf32>
    %470 = arith.truncf %469 : vector<8x32xf32> to vector<8x32xbf16>
    %c32 = arith.constant 32 : index
    %c0_142 = arith.constant 0 : index
    %471 = vector.load %arg7[%c32, %c0_142] : memref<128x32xbf16, #tpu.memory_space<vmem>>, vector<32x32xbf16>
    %cst_143 = arith.constant dense<0.000000e+00> : vector<8x32xf32>
    %472 = tpu.matmul %470, %471, %cst_143 {dimension_numbers = #tpu.dot_dimension_numbers<[1], [0], [0], [1], [0, 0, 1, 1], [], []>} : vector<8x32xbf16>, vector<32x32xbf16>, vector<8x32xf32> -> vector<8x32xf32>
    %473 = arith.addf %468, %472 : vector<8x32xf32>
    %474 = math.tanh %460 : vector<8x32xf32>
    %475 = arith.truncf %474 : vector<8x32xf32> to vector<8x32xbf16>
    %c64 = arith.constant 64 : index
    %c0_144 = arith.constant 0 : index
    %476 = vector.load %arg7[%c64, %c0_144] : memref<128x32xbf16, #tpu.memory_space<vmem>>, vector<32x32xbf16>
    %cst_145 = arith.constant dense<0.000000e+00> : vector<8x32xf32>
    %477 = tpu.matmul %475, %476, %cst_145 {dimension_numbers = #tpu.dot_dimension_numbers<[1], [0], [0], [1], [0, 0, 1, 1], [], []>} : vector<8x32xbf16>, vector<32x32xbf16>, vector<8x32xf32> -> vector<8x32xf32>
    %478 = arith.addf %473, %477 : vector<8x32xf32>
    %479 = math.tanh %458 : vector<8x32xf32>
    %480 = arith.truncf %479 : vector<8x32xf32> to vector<8x32xbf16>
    %c96 = arith.constant 96 : index
    %c0_146 = arith.constant 0 : index
    %481 = vector.load %arg7[%c96, %c0_146] : memref<128x32xbf16, #tpu.memory_space<vmem>>, vector<32x32xbf16>
    %cst_147 = arith.constant dense<0.000000e+00> : vector<8x32xf32>
    %482 = tpu.matmul %480, %481, %cst_147 {dimension_numbers = #tpu.dot_dimension_numbers<[1], [0], [0], [1], [0, 0, 1, 1], [], []>} : vector<8x32xbf16>, vector<32x32xbf16>, vector<8x32xf32> -> vector<8x32xf32>
    %483 = arith.addf %478, %482 : vector<8x32xf32>
    %c0_148 = arith.constant 0 : index
    %c0_149 = arith.constant 0 : index
    %484 = vector.load %arg9[%c0_148, %c0_149] : memref<8x32xf32, #tpu.memory_space<vmem>>, vector<8x32xf32>
    tpu.vector_store %arg9[%c0_148, %c0_149], %483 {strides = array<i32>} : memref<8x32xf32, #tpu.memory_space<vmem>>, vector<8x32xf32>,
    return
  }
}

</mosaic_0001>

<llo_original>
// kernel: qst_encoder_forward.1
$region0: #{qst_encoder_forward.1}
  #allocation0 [shape = 'u32[]', space=smem, size = 0x4, offset = 0x4, fixed_abs, tag = 'smem constant byte address 0x4 - core index']
  #allocation1 [shape = 'u32[72,128]{1,0:T(1,128)}', space=vmem, size = 0x9000, scoped, tag = 'internal scratch']
  #allocation2 [shape = 'f32[64,32]{1,0:T(8,128)}', space=vmem, size = 0x8000, scoped, tag = 'scratch operand']
  #allocation3 [shape = 'f32[64,128]{1,0:T(8,128)}', space=vmem, size = 0x8000, scoped, tag = 'scratch operand']
  %s0 = inlined_call_operand.vmem [shape: f32[64,32], index: 0, kind: input, shape index: {}]
  %s1 = inlined_call_operand.vmem [shape: bf16[32,128], index: 1, kind: input, shape index: {}]
  %s2 = inlined_call_operand.vmem [shape: bf16[32,128], index: 2, kind: input, shape index: {}]
  %s3 = inlined_call_operand.vmem [shape: f32[1,128], index: 3, kind: input, shape index: {}]
  %s4 = inlined_call_operand.vmem [shape: bf16[32,128], index: 4, kind: input, shape index: {}]
  %s5 = inlined_call_operand.vmem [shape: bf16[32,128], index: 5, kind: input, shape index: {}]
  %s6 = inlined_call_operand.vmem [shape: f32[1,128], index: 6, kind: input, shape index: {}]
  %s7 = inlined_call_operand.vmem [shape: bf16[128,32], index: 7, kind: input, shape index: {}]
  %s8 = inlined_call_operand.vmem [shape: f32[1,32], index: 8, kind: input, shape index: {}]
  %s9 = inlined_call_operand.vmem [shape: f32[8,32], index: 9, kind: output, shape index: {}]
  %s10 = sld [smem:[#allocation0]]
  $region46: #{qst_encoder_forward.1} parent=0
    _
  %s12 = ssub.s32 1, %s10
  %s13 = scalar_select 0, %s12, %s10
  // Predicated region
  $region2: #{qst_encoder_forward.1} parent=0 // pred_check
    _
  $region3: #{qst_encoder_forward.1} parent=0 // pred_check_branch
    %15 = sbr.rel (0) target = $region5
  $region4: #{qst_encoder_forward.1} parent=0 // pred_region
    _
  $region5: #{qst_encoder_forward.1} parent=0 // pred_fallthru
    _
  // Predicated region
  $region6: #{qst_encoder_forward.1} parent=0 // pred_check
    _
  $region7: #{qst_encoder_forward.1} parent=0 // pred_check_branch
    %17 = sbr.rel (0) target = $region9
  $region8: #{qst_encoder_forward.1} parent=0 // pred_region
    _
  $region9: #{qst_encoder_forward.1} parent=0 // pred_fallthru
    _
  // Predicated region
  $region10: #{qst_encoder_forward.1} parent=0 // pred_check
    _
  $region11: #{qst_encoder_forward.1} parent=0 // pred_check_branch
    %19 = sbr.rel (0) target = $region13
  $region12: #{qst_encoder_forward.1} parent=0 // pred_region
    _
  $region13: #{qst_encoder_forward.1} parent=0 // pred_fallthru
    _
  // Predicated region
  $region14: #{qst_encoder_forward.1} parent=0 // pred_check
    _
  $region15: #{qst_encoder_forward.1} parent=0 // pred_check_branch
    %21 = sbr.rel (0) target = $region17
  $region16: #{qst_encoder_forward.1} parent=0 // pred_region
    _
  $region17: #{qst_encoder_forward.1} parent=0 // pred_fallthru
    _
  // Predicated region
  $region18: #{qst_encoder_forward.1} parent=0 // pred_check
    _
  $region19: #{qst_encoder_forward.1} parent=0 // pred_check_branch
    %23 = sbr.rel (0) target = $region21
  $region20: #{qst_encoder_forward.1} parent=0 // pred_region
    _
  $region21: #{qst_encoder_forward.1} parent=0 // pred_fallthru
    _
  // Predicated region
  $region22: #{qst_encoder_forward.1} parent=0 // pred_check
    _
  $region23: #{qst_encoder_forward.1} parent=0 // pred_check_branch
    %25 = sbr.rel (0) target = $region25
  $region24: #{qst_encoder_forward.1} parent=0 // pred_region
    _
  $region25: #{qst_encoder_forward.1} parent=0 // pred_fallthru
    _
  // Predicated region
  $region26: #{qst_encoder_forward.1} parent=0 // pred_check
    _
  $region27: #{qst_encoder_forward.1} parent=0 // pred_check_branch
    %27 = sbr.rel (0) target = $region29
  $region28: #{qst_encoder_forward.1} parent=0 // pred_region
    _
  $region29: #{qst_encoder_forward.1} parent=0 // pred_fallthru
    _
  // Predicated region
  $region30: #{qst_encoder_forward.1} parent=0 // pred_check
    _
  $region31: #{qst_encoder_forward.1} parent=0 // pred_check_branch
    %29 = sbr.rel (0) target = $region33
  $region32: #{qst_encoder_forward.1} parent=0 // pred_region
    _
  $region33: #{qst_encoder_forward.1} parent=0 // pred_fallthru
    _
  // Predicated region
  $region34: #{qst_encoder_forward.1} parent=0 // pred_check
    _
  $region35: #{qst_encoder_forward.1} parent=0 // pred_check_branch
    %31 = sbr.rel (0) target = $region37
  $region36: #{qst_encoder_forward.1} parent=0 // pred_region
    _
  $region37: #{qst_encoder_forward.1} parent=0 // pred_fallthru
    _
  %v33 = vlaneseq
  %v34 = vand.u32 %v33, 127
  %vm35 = vcmp.ge.s32.totalorder %v34, 64
  %vm36 = vcmp.lt.s32.totalorder %v34, 96
  %vm37 = vmand %vm35, %vm36
  %v38 = vld [vmem:[%s0] sm:$0xff]
  %v39 = vld [vmem:[%s0 + $0x8] sm:$0xff]
  %v40 = vld [vmem:[%s0 + $0x10] sm:$0xff]
  %v41 = vld [vmem:[%s0 + $0x18] sm:$0xff]
  %v42 = vld [vmem:[%s0 + $0x20] sm:$0xff]
  %v43 = vld [vmem:[%s0 + $0x28] sm:$0xff]
  %v44 = vld [vmem:[%s0 + $0x30] sm:$0xff]
  %v45 = vld [vmem:[%s0 + $0x38] sm:$0xff]
  %v46 = vtanh.pop %v38
  %v47 = vtanh.pop %v39
  %v48 = vtanh.pop %v40
  %v49 = vtanh.pop %v41
  %v50 = vtanh.pop %v42
  %v51 = vtanh.pop %v43
  %v52 = vtanh.pop %v44
  %v53 = vtanh.pop %v45
  %v54 = vpack.c.bf16 %v47, %v46
  %v55 = vpack.c.bf16 %v49, %v48
  %v56 = vpack.c.bf16 %v51, %v50
  %v57 = vpack.c.bf16 %v53, %v52
  %v58 = vld [vmem:[%s1] sm:$0xf]
  %v59 = vld [vmem:[%s1 + $0x4] sm:$0xf]
  %v60 = vld [vmem:[%s1 + $0x8] sm:$0xf]
  %v61 = vld [vmem:[%s1 + $0xc] sm:$0xf]
  %v62 = vld [vmem:[%s3] sm:$0x1]
  %v64 = vperm.slane %v62, 0
  %v70 = vunpack.c.l.b16 %v58
  %v71 = vunpack.c.l.b16 %v59
  %v72 = vunpack.c.l.b16 %v60
  %v73 = vunpack.c.l.b16 %v61
  %v74 = vpack.c.b16 %v71, %v70
  %v75 = vpack.c.b16 %v73, %v72
  %vm78 = vcmask 261120
  %v80 = vsel %vm78, %v54, 0
  %v83 = vsel %vm78, %v55, 0
  %v86 = vsel %vm78, %v56, 0
  %v89 = vsel %vm78, %v57, 0
  %91 = vmatpush.bf16.msra.mxu0 0
  %92 = vmatpush.bf16.msra.mxu0 0
  %93 = vmatpush.bf16.msra.mxu0 0
  %94 = vmatpush.bf16.msra.mxu0 0
  %95 = vmatpush.bf16.msra.mxu0 0
  %96 = vmatpush.bf16.msra.mxu0 0
  %97 = vmatpush.bf16.msra.mxu0 %v75
  %98 = vmatpush.bf16.msra.mxu0 %v74
  %99 = vmatmul.bf16.gmra.mxu0 %v80
  %v100 = vpop.f32.mrf.mxu0
  %v101 = vadd.f32 %v64, %v100
  %v102 = vpop.f32.mrf.mxu0
  %v103 = vadd.f32 %v64, %v102
  %104 = vmatmul.bf16.gmra.mxu0 %v83
  %v105 = vpop.f32.mrf.mxu0
  %v106 = vadd.f32 %v64, %v105
  %v107 = vpop.f32.mrf.mxu0
  %v108 = vadd.f32 %v64, %v107
  %109 = vmatmul.bf16.gmra.mxu0 %v86
  %v110 = vpop.f32.mrf.mxu0
  %v111 = vadd.f32 %v64, %v110
  %v112 = vpop.f32.mrf.mxu0
  %v113 = vadd.f32 %v64, %v112
  %114 = vmatmul.bf16.gmra.mxu0 %v89
  %v115 = vpop.f32.mrf.mxu0
  %v116 = vadd.f32 %v64, %v115
  %v117 = vpop.f32.mrf.mxu0
  %v118 = vadd.f32 %v64, %v117
  %119 = vdwg.mxu0
  %120 = vst [vmem:[#allocation3] sm:$0xff] %v101
  %121 = vst [vmem:[#allocation3 + $0x8] sm:$0xff] %v103
  %122 = vst [vmem:[#allocation3 + $0x10] sm:$0xff] %v106
  %123 = vst [vmem:[#allocation3 + $0x18] sm:$0xff] %v108
  %124 = vst [vmem:[#allocation3 + $0x20] sm:$0xff] %v111
  %125 = vst [vmem:[#allocation3 + $0x28] sm:$0xff] %v113
  %126 = vst [vmem:[#allocation3 + $0x30] sm:$0xff] %v116
  %127 = vst [vmem:[#allocation3 + $0x38] sm:$0xff] %v118
  %v128 = vld [vmem:[%s2] sm:$0xf]
  %v129 = vld [vmem:[%s2 + $0x4] sm:$0xf]
  %v130 = vld [vmem:[%s2 + $0x8] sm:$0xf]
  %v131 = vld [vmem:[%s2 + $0xc] sm:$0xf]
  %v132 = vld [vmem:[#allocation3] sm:$0xff]
  %v137 = vunpack.c.l.b16 %v128
  %v138 = vunpack.c.l.b16 %v129
  %v139 = vunpack.c.l.b16 %v130
  %v140 = vunpack.c.l.b16 %v131
  %v141 = vpack.c.b16 %v138, %v137
  %v142 = vpack.c.b16 %v140, %v139
  %v146 = vsel %vm78, 0, 0
  %148 = vmatpush.bf16.msra.mxu0 0
  %149 = vmatpush.bf16.msra.mxu0 0
  %150 = vmatpush.bf16.msra.mxu0 0
  %151 = vmatpush.bf16.msra.mxu0 0
  %152 = vmatpush.bf16.msra.mxu0 0
  %153 = vmatpush.bf16.msra.mxu0 0
  %154 = vmatpush.bf16.msra.mxu0 %v142
  %155 = vmatpush.bf16.msra.mxu0 %v141
  %156 = vmatmul.bf16.gmra.mxu0 %v146
  %v157 = vpop.f32.mrf.mxu0
  %v158 = vadd.f32 0.0, %v157
  %v159 = vpop.f32.mrf.mxu0
  %160 = vdwg.mxu0
  %v161 = vadd.f32 %v132, %v158
  %v162 = vxor.u32 %v161, 2147483648
  %v163 = vmul.f32 %v162, 1.442695
  %v164 = vpow.pop %v163
  %v165 = vadd.f32 %v164, 1.0
  %v166 = vrcp.pop %v165
  %v167 = vmul.f32 %v165, %v166
  %v168 = vsub.f32 1.0, %v167
  %v169 = vmul.f32 %v166, %v168
  %v170 = vadd.f32 %v166, %v169
  %vm171 = vweird.f32 %v165
  %vm172 = vweird.f32 %v166
  %vm173 = vmor %vm171, %vm172
  %v174 = vsel %vm173, %v166, %v170
  %v175 = vand.u32 2147483647, %v165
  %vm176 = vcmp.eq.f32.partialorder %v175, 8.507059e+37
  %v177 = vand.u32 %v165, 2147483648
  %v178 = vor.u32 1.1754944e-38, %v177
  %v179 = vsel %vm176, %v178, %v174
  %v180 = vmul.f32 1.0, %v179
  %v181 = vmul.f32 %v180, 2.0
  %v182 = vsub.f32 %v181, 1.0
  %v183 = vsel %vm37, %v182, %v180
  %v184 = vmul.f32 %v183, 0.0
  %186 = vrot.lane.b32.xlu0 %v183, 64
  %v187 = vpop.permute.xlu0 %186
  %v189 = vmul.f32 %v183, %v187
  %191 = vrot.lane.b32.xlu0 %v189, 32
  %v192 = vpop.permute.xlu0 %191
  %v194 = vadd.f32 %v184, %v192
  %v195 = vtanh.pop %v194
  %197 = vrot.lane.b32.xlu0 %v195, 64
  %v198 = vpop.permute.xlu0 %197
  %v200 = vmul.f32 %v183, %v198
  %202 = vrot.lane.b32.xlu0 %v200, 32
  %v203 = vpop.permute.xlu0 %202
  %205 = vst.msk [vmem:[#allocation2] sm:$0xff] %vm78, %v203
  %s206 = scalar_lea.vmem [#allocation3], 8
  %v207 = vld [vmem:[%s206] sm:$0xff]
  %v208 = vpack.c.bf16 %v200, %v200
  %210 = vrot.lane.b32.xlu0 %v208, 32
  %v211 = vpop.permute.xlu0 %210
  %v213 = vsel %vm78, %v211, 0
  %215 = vmatpush.bf16.msra.mxu0 0
  %216 = vmatpush.bf16.msra.mxu0 0
  %217 = vmatpush.bf16.msra.mxu0 0
  %218 = vmatpush.bf16.msra.mxu0 0
  %219 = vmatpush.bf16.msra.mxu0 0
  %220 = vmatpush.bf16.msra.mxu0 0
  %221 = vmatpush.bf16.msra.mxu0 %v142
  %222 = vmatpush.bf16.msra.mxu0 %v141
  %223 = vmatmul.bf16.gmra.mxu0 %v213
  %v224 = vpop.f32.mrf.mxu0
  %v225 = vadd.f32 0.0, %v224
  %v226 = vpop.f32.mrf.mxu0
  %227 = vdwg.mxu0
  %v228 = vadd.f32 %v207, %v225
  %v229 = vxor.u32 %v228, 2147483648
  %v230 = vmul.f32 %v229, 1.442695
  %v231 = vpow.pop %v230
  %v232 = vadd.f32 %v231, 1.0
  %v233 = vrcp.pop %v232
  %v234 = vmul.f32 %v232, %v233
  %v235 = vsub.f32 1.0, %v234
  %v236 = vmul.f32 %v233, %v235
  %v237 = vadd.f32 %v233, %v236
  %vm238 = vweird.f32 %v232
  %vm239 = vweird.f32 %v233
  %vm240 = vmor %vm238, %vm239
  %v241 = vsel %vm240, %v233, %v237
  %v242 = vand.u32 2147483647, %v232
  %vm243 = vcmp.eq.f32.partialorder %v242, 8.507059e+37
  %v244 = vand.u32 %v232, 2147483648
  %v245 = vor.u32 1.1754944e-38, %v244
  %v246 = vsel %vm243, %v245, %v241
  %v247 = vmul.f32 1.0, %v246
  %v248 = vmul.f32 %v247, 2.0
  %v249 = vsub.f32 %v248, 1.0
  %v250 = vsel %vm37, %v249, %v247
  %v251 = vmul.f32 %v250, %v194
  %253 = vrot.lane.b32.xlu0 %v250, 64
  %v254 = vpop.permute.xlu0 %253
  %v256 = vmul.f32 %v250, %v254
  %258 = vrot.lane.b32.xlu0 %v256, 32
  %v259 = vpop.permute.xlu0 %258
  %v261 = vadd.f32 %v251, %v259
  %v262 = vtanh.pop %v261
  %264 = vrot.lane.b32.xlu0 %v262, 64
  %v265 = vpop.permute.xlu0 %264
  %v267 = vmul.f32 %v250, %v265
  %269 = vrot.lane.b32.xlu0 %v267, 32
  %v270 = vpop.permute.xlu0 %269
  %s272 = scalar_lea.vmem [#allocation2], 8
  %273 = vst.msk [vmem:[%s272] sm:$0xff] %vm78, %v270
  %s274 = scalar_lea.vmem [#allocation3], 16
  %v275 = vld [vmem:[%s274] sm:$0xff]
  %v276 = vpack.c.bf16 %v267, %v267
  %278 = vrot.lane.b32.xlu0 %v276, 32
  %v279 = vpop.permute.xlu0 %278
  %v281 = vsel %vm78, %v279, 0
  %283 = vmatpush.bf16.msra.mxu0 0
  %284 = vmatpush.bf16.msra.mxu0 0
  %285 = vmatpush.bf16.msra.mxu0 0
  %286 = vmatpush.bf16.msra.mxu0 0
  %287 = vmatpush.bf16.msra.mxu0 0
  %288 = vmatpush.bf16.msra.mxu0 0
  %289 = vmatpush.bf16.msra.mxu0 %v142
  %290 = vmatpush.bf16.msra.mxu0 %v141
  %291 = vmatmul.bf16.gmra.mxu0 %v281
  %v292 = vpop.f32.mrf.mxu0
  %v293 = vadd.f32 0.0, %v292
  %v294 = vpop.f32.mrf.mxu0
  %295 = vdwg.mxu0
  %v296 = vadd.f32 %v275, %v293
  %v297 = vxor.u32 %v296, 2147483648
  %v298 = vmul.f32 %v297, 1.442695
  %v299 = vpow.pop %v298
  %v300 = vadd.f32 %v299, 1.0
  %v301 = vrcp.pop %v300
  %v302 = vmul.f32 %v300, %v301
  %v303 = vsub.f32 1.0, %v302
  %v304 = vmul.f32 %v301, %v303
  %v305 = vadd.f32 %v301, %v304
  %vm306 = vweird.f32 %v300
  %vm307 = vweird.f32 %v301
  %vm308 = vmor %vm306, %vm307
  %v309 = vsel %vm308, %v301, %v305
  %v310 = vand.u32 2147483647, %v300
  %vm311 = vcmp.eq.f32.partialorder %v310, 8.507059e+37
  %v312 = vand.u32 %v300, 2147483648
  %v313 = vor.u32 1.1754944e-38, %v312
  %v314 = vsel %vm311, %v313, %v309
  %v315 = vmul.f32 1.0, %v314
  %v316 = vmul.f32 %v315, 2.0
  %v317 = vsub.f32 %v316, 1.0
  %v318 = vsel %vm37, %v317, %v315
  %v319 = vmul.f32 %v318, %v261
  %321 = vrot.lane.b32.xlu0 %v318, 64
  %v322 = vpop.permute.xlu0 %321
  %v324 = vmul.f32 %v318, %v322
  %326 = vrot.lane.b32.xlu0 %v324, 32
  %v327 = vpop.permute.xlu0 %326
  %v329 = vadd.f32 %v319, %v327
  %v330 = vtanh.pop %v329
  %332 = vrot.lane.b32.xlu0 %v330, 64
  %v333 = vpop.permute.xlu0 %332
  %v335 = vmul.f32 %v318, %v333
  %337 = vrot.lane.b32.xlu0 %v335, 32
  %v338 = vpop.permute.xlu0 %337
  %s340 = scalar_lea.vmem [#allocation2], 16
  %341 = vst.msk [vmem:[%s340] sm:$0xff] %vm78, %v338
  %s342 = scalar_lea.vmem [#allocation3], 24
  %v343 = vld [vmem:[%s342] sm:$0xff]
  %v344 = vpack.c.bf16 %v335, %v335
  %346 = vrot.lane.b32.xlu0 %v344, 32
  %v347 = vpop.permute.xlu0 %346
  %v349 = vsel %vm78, %v347, 0
  %351 = vmatpush.bf16.msra.mxu0 0
  %352 = vmatpush.bf16.msra.mxu0 0
  %353 = vmatpush.bf16.msra.mxu0 0
  %354 = vmatpush.bf16.msra.mxu0 0
  %355 = vmatpush.bf16.msra.mxu0 0
  %356 = vmatpush.bf16.msra.mxu0 0
  %357 = vmatpush.bf16.msra.mxu0 %v142
  %358 = vmatpush.bf16.msra.mxu0 %v141
  %359 = vmatmul.bf16.gmra.mxu0 %v349
  %v360 = vpop.f32.mrf.mxu0
  %v361 = vadd.f32 0.0, %v360
  %v362 = vpop.f32.mrf.mxu0
  %363 = vdwg.mxu0
  %v364 = vadd.f32 %v343, %v361
  %v365 = vxor.u32 %v364, 2147483648
  %v366 = vmul.f32 %v365, 1.442695
  %v367 = vpow.pop %v366
  %v368 = vadd.f32 %v367, 1.0
  %v369 = vrcp.pop %v368
  %v370 = vmul.f32 %v368, %v369
  %v371 = vsub.f32 1.0, %v370
  %v372 = vmul.f32 %v369, %v371
  %v373 = vadd.f32 %v369, %v372
  %vm374 = vweird.f32 %v368
  %vm375 = vweird.f32 %v369
  %vm376 = vmor %vm374, %vm375
  %v377 = vsel %vm376, %v369, %v373
  %v378 = vand.u32 2147483647, %v368
  %vm379 = vcmp.eq.f32.partialorder %v378, 8.507059e+37
  %v380 = vand.u32 %v368, 2147483648
  %v381 = vor.u32 1.1754944e-38, %v380
  %v382 = vsel %vm379, %v381, %v377
  %v383 = vmul.f32 1.0, %v382
  %v384 = vmul.f32 %v383, 2.0
  %v385 = vsub.f32 %v384, 1.0
  %v386 = vsel %vm37, %v385, %v383
  %v387 = vmul.f32 %v386, %v329
  %389 = vrot.lane.b32.xlu0 %v386, 64
  %v390 = vpop.permute.xlu0 %389
  %v392 = vmul.f32 %v386, %v390
  %394 = vrot.lane.b32.xlu0 %v392, 32
  %v395 = vpop.permute.xlu0 %394
  %v397 = vadd.f32 %v387, %v395
  %v398 = vtanh.pop %v397
  %400 = vrot.lane.b32.xlu0 %v398, 64
  %v401 = vpop.permute.xlu0 %400
  %v403 = vmul.f32 %v386, %v401
  %405 = vrot.lane.b32.xlu0 %v403, 32
  %v406 = vpop.permute.xlu0 %405
  %s408 = scalar_lea.vmem [#allocation2], 24
  %409 = vst.msk [vmem:[%s408] sm:$0xff] %vm78, %v406
  %s410 = scalar_lea.vmem [#allocation3], 32
  %v411 = vld [vmem:[%s410] sm:$0xff]
  %v412 = vpack.c.bf16 %v403, %v403
  %414 = vrot.lane.b32.xlu0 %v412, 32
  %v415 = vpop.permute.xlu0 %414
  %v417 = vsel %vm78, %v415, 0
  %419 = vmatpush.bf16.msra.mxu0 0
  %420 = vmatpush.bf16.msra.mxu0 0
  %421 = vmatpush.bf16.msra.mxu0 0
  %422 = vmatpush.bf16.msra.mxu0 0
  %423 = vmatpush.bf16.msra.mxu0 0
  %424 = vmatpush.bf16.msra.mxu0 0
  %425 = vmatpush.bf16.msra.mxu0 %v142
  %426 = vmatpush.bf16.msra.mxu0 %v141
  %427 = vmatmul.bf16.gmra.mxu0 %v417
  %v428 = vpop.f32.mrf.mxu0
  %v429 = vadd.f32 0.0, %v428
  %v430 = vpop.f32.mrf.mxu0
  %431 = vdwg.mxu0
  %v432 = vadd.f32 %v411, %v429
  %v433 = vxor.u32 %v432, 2147483648
  %v434 = vmul.f32 %v433, 1.442695
  %v435 = vpow.pop %v434
  %v436 = vadd.f32 %v435, 1.0
  %v437 = vrcp.pop %v436
  %v438 = vmul.f32 %v436, %v437
  %v439 = vsub.f32 1.0, %v438
  %v440 = vmul.f32 %v437, %v439
  %v441 = vadd.f32 %v437, %v440
  %vm442 = vweird.f32 %v436
  %vm443 = vweird.f32 %v437
  %vm444 = vmor %vm442, %vm443
  %v445 = vsel %vm444, %v437, %v441
  %v446 = vand.u32 2147483647, %v436
  %vm447 = vcmp.eq.f32.partialorder %v446, 8.507059e+37
  %v448 = vand.u32 %v436, 2147483648
  %v449 = vor.u32 1.1754944e-38, %v448
  %v450 = vsel %vm447, %v449, %v445
  %v451 = vmul.f32 1.0, %v450
  %v452 = vmul.f32 %v451, 2.0
  %v453 = vsub.f32 %v452, 1.0
  %v454 = vsel %vm37, %v453, %v451
  %v455 = vmul.f32 %v454, %v397
  %457 = vrot.lane.b32.xlu0 %v454, 64
  %v458 = vpop.permute.xlu0 %457
  %v460 = vmul.f32 %v454, %v458
  %462 = vrot.lane.b32.xlu0 %v460, 32
  %v463 = vpop.permute.xlu0 %462
  %v465 = vadd.f32 %v455, %v463
  %v466 = vtanh.pop %v465
  %468 = vrot.lane.b32.xlu0 %v466, 64
  %v469 = vpop.permute.xlu0 %468
  %v471 = vmul.f32 %v454, %v469
  %473 = vrot.lane.b32.xlu0 %v471, 32
  %v474 = vpop.permute.xlu0 %473
  %s476 = scalar_lea.vmem [#allocation2], 32
  %477 = vst.msk [vmem:[%s476] sm:$0xff] %vm78, %v474
  %s478 = scalar_lea.vmem [#allocation3], 40
  %v479 = vld [vmem:[%s478] sm:$0xff]
  %v480 = vpack.c.bf16 %v471, %v471
  %482 = vrot.lane.b32.xlu0 %v480, 32
  %v483 = vpop.permute.xlu0 %482
  %v485 = vsel %vm78, %v483, 0
  %487 = vmatpush.bf16.msra.mxu0 0
  %488 = vmatpush.bf16.msra.mxu0 0
  %489 = vmatpush.bf16.msra.mxu0 0
  %490 = vmatpush.bf16.msra.mxu0 0
  %491 = vmatpush.bf16.msra.mxu0 0
  %492 = vmatpush.bf16.msra.mxu0 0
  %493 = vmatpush.bf16.msra.mxu0 %v142
  %494 = vmatpush.bf16.msra.mxu0 %v141
  %495 = vmatmul.bf16.gmra.mxu0 %v485
  %v496 = vpop.f32.mrf.mxu0
  %v497 = vadd.f32 0.0, %v496
  %v498 = vpop.f32.mrf.mxu0
  %499 = vdwg.mxu0
  %v500 = vadd.f32 %v479, %v497
  %v501 = vxor.u32 %v500, 2147483648
  %v502 = vmul.f32 %v501, 1.442695
  %v503 = vpow.pop %v502
  %v504 = vadd.f32 %v503, 1.0
  %v505 = vrcp.pop %v504
  %v506 = vmul.f32 %v504, %v505
  %v507 = vsub.f32 1.0, %v506
  %v508 = vmul.f32 %v505, %v507
  %v509 = vadd.f32 %v505, %v508
  %vm510 = vweird.f32 %v504
  %vm511 = vweird.f32 %v505
  %vm512 = vmor %vm510, %vm511
  %v513 = vsel %vm512, %v505, %v509
  %v514 = vand.u32 2147483647, %v504
  %vm515 = vcmp.eq.f32.partialorder %v514, 8.507059e+37
  %v516 = vand.u32 %v504, 2147483648
  %v517 = vor.u32 1.1754944e-38, %v516
  %v518 = vsel %vm515, %v517, %v513
  %v519 = vmul.f32 1.0, %v518
  %v520 = vmul.f32 %v519, 2.0
  %v521 = vsub.f32 %v520, 1.0
  %v522 = vsel %vm37, %v521, %v519
  %v523 = vmul.f32 %v522, %v465
  %525 = vrot.lane.b32.xlu0 %v522, 64
  %v526 = vpop.permute.xlu0 %525
  %v528 = vmul.f32 %v522, %v526
  %530 = vrot.lane.b32.xlu0 %v528, 32
  %v531 = vpop.permute.xlu0 %530
  %v533 = vadd.f32 %v523, %v531
  %v534 = vtanh.pop %v533
  %536 = vrot.lane.b32.xlu0 %v534, 64
  %v537 = vpop.permute.xlu0 %536
  %v539 = vmul.f32 %v522, %v537
  %541 = vrot.lane.b32.xlu0 %v539, 32
  %v542 = vpop.permute.xlu0 %541
  %s544 = scalar_lea.vmem [#allocation2], 40
  %545 = vst.msk [vmem:[%s544] sm:$0xff] %vm78, %v542
  %s546 = scalar_lea.vmem [#allocation3], 48
  %v547 = vld [vmem:[%s546] sm:$0xff]
  %v548 = vpack.c.bf16 %v539, %v539
  %550 = vrot.lane.b32.xlu0 %v548, 32
  %v551 = vpop.permute.xlu0 %550
  %v553 = vsel %vm78, %v551, 0
  %555 = vmatpush.bf16.msra.mxu0 0
  %556 = vmatpush.bf16.msra.mxu0 0
  %557 = vmatpush.bf16.msra.mxu0 0
  %558 = vmatpush.bf16.msra.mxu0 0
  %559 = vmatpush.bf16.msra.mxu0 0
  %560 = vmatpush.bf16.msra.mxu0 0
  %561 = vmatpush.bf16.msra.mxu0 %v142
  %562 = vmatpush.bf16.msra.mxu0 %v141
  %563 = vmatmul.bf16.gmra.mxu0 %v553
  %v564 = vpop.f32.mrf.mxu0
  %v565 = vadd.f32 0.0, %v564
  %v566 = vpop.f32.mrf.mxu0
  %567 = vdwg.mxu0
  %v568 = vadd.f32 %v547, %v565
  %v569 = vxor.u32 %v568, 2147483648
  %v570 = vmul.f32 %v569, 1.442695
  %v571 = vpow.pop %v570
  %v572 = vadd.f32 %v571, 1.0
  %v573 = vrcp.pop %v572
  %v574 = vmul.f32 %v572, %v573
  %v575 = vsub.f32 1.0, %v574
  %v576 = vmul.f32 %v573, %v575
  %v577 = vadd.f32 %v573, %v576
  %vm578 = vweird.f32 %v572
  %vm579 = vweird.f32 %v573
  %vm580 = vmor %vm578, %vm579
  %v581 = vsel %vm580, %v573, %v577
  %v582 = vand.u32 2147483647, %v572
  %vm583 = vcmp.eq.f32.partialorder %v582, 8.507059e+37
  %v584 = vand.u32 %v572, 2147483648
  %v585 = vor.u32 1.1754944e-38, %v584
  %v586 = vsel %vm583, %v585, %v581
  %v587 = vmul.f32 1.0, %v586
  %v588 = vmul.f32 %v587, 2.0
  %v589 = vsub.f32 %v588, 1.0
  %v590 = vsel %vm37, %v589, %v587
  %v591 = vmul.f32 %v590, %v533
  %593 = vrot.lane.b32.xlu0 %v590, 64
  %v594 = vpop.permute.xlu0 %593
  %v596 = vmul.f32 %v590, %v594
  %598 = vrot.lane.b32.xlu0 %v596, 32
  %v599 = vpop.permute.xlu0 %598
  %v601 = vadd.f32 %v591, %v599
  %v602 = vtanh.pop %v601
  %604 = vrot.lane.b32.xlu0 %v602, 64
  %v605 = vpop.permute.xlu0 %604
  %v607 = vmul.f32 %v590, %v605
  %609 = vrot.lane.b32.xlu0 %v607, 32
  %v610 = vpop.permute.xlu0 %609
  %s612 = scalar_lea.vmem [#allocation2], 48
  %613 = vst.msk [vmem:[%s612] sm:$0xff] %vm78, %v610
  %s614 = scalar_lea.vmem [#allocation3], 56
  %v615 = vld [vmem:[%s614] sm:$0xff]
  %v616 = vpack.c.bf16 %v607, %v607
  %618 = vrot.lane.b32.xlu0 %v616, 32
  %v619 = vpop.permute.xlu0 %618
  %v621 = vsel %vm78, %v619, 0
  %623 = vmatpush.bf16.msra.mxu0 0
  %624 = vmatpush.bf16.msra.mxu0 0
  %625 = vmatpush.bf16.msra.mxu0 0
  %626 = vmatpush.bf16.msra.mxu0 0
  %627 = vmatpush.bf16.msra.mxu0 0
  %628 = vmatpush.bf16.msra.mxu0 0
  %629 = vmatpush.bf16.msra.mxu0 %v142
  %630 = vmatpush.bf16.msra.mxu0 %v141
  %631 = vmatmul.bf16.gmra.mxu0 %v621
  %v632 = vpop.f32.mrf.mxu0
  %v633 = vadd.f32 0.0, %v632
  %v634 = vpop.f32.mrf.mxu0
  %635 = vdwg.mxu0
  %v636 = vadd.f32 %v615, %v633
  %v637 = vxor.u32 %v636, 2147483648
  %v638 = vmul.f32 %v637, 1.442695
  %v639 = vpow.pop %v638
  %v640 = vadd.f32 %v639, 1.0
  %v641 = vrcp.pop %v640
  %v642 = vmul.f32 %v640, %v641
  %v643 = vsub.f32 1.0, %v642
  %v644 = vmul.f32 %v641, %v643
  %v645 = vadd.f32 %v641, %v644
  %vm646 = vweird.f32 %v640
  %vm647 = vweird.f32 %v641
  %vm648 = vmor %vm646, %vm647
  %v649 = vsel %vm648, %v641, %v645
  %v650 = vand.u32 2147483647, %v640
  %vm651 = vcmp.eq.f32.partialorder %v650, 8.507059e+37
  %v652 = vand.u32 %v640, 2147483648
  %v653 = vor.u32 1.1754944e-38, %v652
  %v654 = vsel %vm651, %v653, %v649
  %v655 = vmul.f32 1.0, %v654
  %v656 = vmul.f32 %v655, 2.0
  %v657 = vsub.f32 %v656, 1.0
  %v658 = vsel %vm37, %v657, %v655
  %v659 = vmul.f32 %v658, %v601
  %661 = vrot.lane.b32.xlu0 %v658, 64
  %v662 = vpop.permute.xlu0 %661
  %v664 = vmul.f32 %v658, %v662
  %666 = vrot.lane.b32.xlu0 %v664, 32
  %v667 = vpop.permute.xlu0 %666
  %v669 = vadd.f32 %v659, %v667
  %v670 = vtanh.pop %v669
  %672 = vrot.lane.b32.xlu0 %v670, 64
  %v673 = vpop.permute.xlu0 %672
  %v675 = vmul.f32 %v658, %v673
  %677 = vrot.lane.b32.xlu0 %v675, 32
  %v678 = vpop.permute.xlu0 %677
  %s680 = scalar_lea.vmem [#allocation2], 56
  %681 = vst.msk [vmem:[%s680] sm:$0xff] %vm78, %v678
  %v682 = vld [vmem:[#allocation2] sm:$0xff]
  %v683 = vld [vmem:[#allocation2 + $0x8] sm:$0xff]
  %v684 = vld [vmem:[#allocation2 + $0x10] sm:$0xff]
  %v685 = vld [vmem:[#allocation2 + $0x18] sm:$0xff]
  %v686 = vld [vmem:[#allocation2 + $0x20] sm:$0xff]
  %v687 = vld [vmem:[#allocation2 + $0x28] sm:$0xff]
  %v688 = vld [vmem:[#allocation2 + $0x30] sm:$0xff]
  %v689 = vld [vmem:[#allocation2 + $0x38] sm:$0xff]
  %v690 = vpack.c.bf16 %v683, %v682
  %v691 = vpack.c.bf16 %v685, %v684
  %v692 = vpack.c.bf16 %v687, %v686
  %v693 = vpack.c.bf16 %v689, %v688
  %v694 = vld [vmem:[%s4] sm:$0xf]
  %v695 = vld [vmem:[%s4 + $0x4] sm:$0xf]
  %v696 = vld [vmem:[%s4 + $0x8] sm:$0xf]
  %v697 = vld [vmem:[%s4 + $0xc] sm:$0xf]
  %v698 = vld [vmem:[%s6] sm:$0x1]
  %v700 = vperm.slane %v698, 0
  %v706 = vunpack.c.l.b16 %v694
  %v707 = vunpack.c.l.b16 %v695
  %v708 = vunpack.c.l.b16 %v696
  %v709 = vunpack.c.l.b16 %v697
  %v710 = vpack.c.b16 %v707, %v706
  %v711 = vpack.c.b16 %v709, %v708
  %v715 = vsel %vm78, %v690, 0
  %v718 = vsel %vm78, %v691, 0
  %v721 = vsel %vm78, %v692, 0
  %v724 = vsel %vm78, %v693, 0
  %726 = vmatpush.bf16.msra.mxu0 0
  %727 = vmatpush.bf16.msra.mxu0 0
  %728 = vmatpush.bf16.msra.mxu0 0
  %729 = vmatpush.bf16.msra.mxu0 0
  %730 = vmatpush.bf16.msra.mxu0 0
  %731 = vmatpush.bf16.msra.mxu0 0
  %732 = vmatpush.bf16.msra.mxu0 %v711
  %733 = vmatpush.bf16.msra.mxu0 %v710
  %734 = vmatmul.bf16.gmra.mxu0 %v715
  %v735 = vpop.f32.mrf.mxu0
  %v736 = vadd.f32 %v700, %v735
  %v737 = vpop.f32.mrf.mxu0
  %v738 = vadd.f32 %v700, %v737
  %739 = vmatmul.bf16.gmra.mxu0 %v718
  %v740 = vpop.f32.mrf.mxu0
  %v741 = vadd.f32 %v700, %v740
  %v742 = vpop.f32.mrf.mxu0
  %v743 = vadd.f32 %v700, %v742
  %744 = vmatmul.bf16.gmra.mxu0 %v721
  %v745 = vpop.f32.mrf.mxu0
  %v746 = vadd.f32 %v700, %v745
  %v747 = vpop.f32.mrf.mxu0
  %v748 = vadd.f32 %v700, %v747
  %749 = vmatmul.bf16.gmra.mxu0 %v724
  %v750 = vpop.f32.mrf.mxu0
  %v751 = vadd.f32 %v700, %v750
  %v752 = vpop.f32.mrf.mxu0
  %v753 = vadd.f32 %v700, %v752
  %754 = vdwg.mxu0
  %755 = vst [vmem:[#allocation3] sm:$0xff] %v736
  %756 = vst [vmem:[#allocation3 + $0x8] sm:$0xff] %v738
  %757 = vst [vmem:[#allocation3 + $0x10] sm:$0xff] %v741
  %758 = vst [vmem:[#allocation3 + $0x18] sm:$0xff] %v743
  %759 = vst [vmem:[#allocation3 + $0x20] sm:$0xff] %v746
  %760 = vst [vmem:[#allocation3 + $0x28] sm:$0xff] %v748
  %761 = vst [vmem:[#allocation3 + $0x30] sm:$0xff] %v751
  %762 = vst [vmem:[#allocation3 + $0x38] sm:$0xff] %v753
  %v763 = vld [vmem:[%s5] sm:$0xf]
  %v764 = vld [vmem:[%s5 + $0x4] sm:$0xf]
  %v765 = vld [vmem:[%s5 + $0x8] sm:$0xf]
  %v766 = vld [vmem:[%s5 + $0xc] sm:$0xf]
  %v767 = vld [vmem:[#allocation3] sm:$0xff]
  %v772 = vunpack.c.l.b16 %v763
  %v773 = vunpack.c.l.b16 %v764
  %v774 = vunpack.c.l.b16 %v765
  %v775 = vunpack.c.l.b16 %v766
  %v776 = vpack.c.b16 %v773, %v772
  %v777 = vpack.c.b16 %v775, %v774
  %780 = vmatpush.bf16.msra.mxu0 0
  %781 = vmatpush.bf16.msra.mxu0 0
  %782 = vmatpush.bf16.msra.mxu0 0
  %783 = vmatpush.bf16.msra.mxu0 0
  %784 = vmatpush.bf16.msra.mxu0 0
  %785 = vmatpush.bf16.msra.mxu0 0
  %786 = vmatpush.bf16.msra.mxu0 %v777
  %787 = vmatpush.bf16.msra.mxu0 %v776
  %788 = vmatmul.bf16.gmra.mxu0 %v146
  %v789 = vpop.f32.mrf.mxu0
  %v790 = vadd.f32 0.0, %v789
  %v791 = vpop.f32.mrf.mxu0
  %792 = vdwg.mxu0
  %v793 = vadd.f32 %v767, %v790
  %v794 = vxor.u32 %v793, 2147483648
  %v795 = vmul.f32 %v794, 1.442695
  %v796 = vpow.pop %v795
  %v797 = vadd.f32 %v796, 1.0
  %v798 = vrcp.pop %v797
  %v799 = vmul.f32 %v797, %v798
  %v800 = vsub.f32 1.0, %v799
  %v801 = vmul.f32 %v798, %v800
  %v802 = vadd.f32 %v798, %v801
  %vm803 = vweird.f32 %v797
  %vm804 = vweird.f32 %v798
  %vm805 = vmor %vm803, %vm804
  %v806 = vsel %vm805, %v798, %v802
  %v807 = vand.u32 2147483647, %v797
  %vm808 = vcmp.eq.f32.partialorder %v807, 8.507059e+37
  %v809 = vand.u32 %v797, 2147483648
  %v810 = vor.u32 1.1754944e-38, %v809
  %v811 = vsel %vm808, %v810, %v806
  %v812 = vmul.f32 1.0, %v811
  %v813 = vmul.f32 %v812, 2.0
  %v814 = vsub.f32 %v813, 1.0
  %v815 = vsel %vm37, %v814, %v812
  %v816 = vmul.f32 %v815, 0.0
  %818 = vrot.lane.b32.xlu0 %v815, 64
  %v819 = vpop.permute.xlu0 %818
  %v821 = vmul.f32 %v815, %v819
  %823 = vrot.lane.b32.xlu0 %v821, 32
  %v824 = vpop.permute.xlu0 %823
  %v826 = vadd.f32 %v816, %v824
  %v827 = vtanh.pop %v826
  %829 = vrot.lane.b32.xlu0 %v827, 64
  %v830 = vpop.permute.xlu0 %829
  %v832 = vmul.f32 %v815, %v830
  %v833 = vld [vmem:[%s206] sm:$0xff]
  %v834 = vpack.c.bf16 %v832, %v832
  %836 = vrot.lane.b32.xlu0 %v834, 32
  %v837 = vpop.permute.xlu0 %836
  %v839 = vsel %vm78, %v837, 0
  %841 = vmatpush.bf16.msra.mxu0 0
  %842 = vmatpush.bf16.msra.mxu0 0
  %843 = vmatpush.bf16.msra.mxu0 0
  %844 = vmatpush.bf16.msra.mxu0 0
  %845 = vmatpush.bf16.msra.mxu0 0
  %846 = vmatpush.bf16.msra.mxu0 0
  %847 = vmatpush.bf16.msra.mxu0 %v777
  %848 = vmatpush.bf16.msra.mxu0 %v776
  %849 = vmatmul.bf16.gmra.mxu0 %v839
  %v850 = vpop.f32.mrf.mxu0
  %v851 = vadd.f32 0.0, %v850
  %v852 = vpop.f32.mrf.mxu0
  %853 = vdwg.mxu0
  %v854 = vadd.f32 %v833, %v851
  %v855 = vxor.u32 %v854, 2147483648
  %v856 = vmul.f32 %v855, 1.442695
  %v857 = vpow.pop %v856
  %v858 = vadd.f32 %v857, 1.0
  %v859 = vrcp.pop %v858
  %v860 = vmul.f32 %v858, %v859
  %v861 = vsub.f32 1.0, %v860
  %v862 = vmul.f32 %v859, %v861
  %v863 = vadd.f32 %v859, %v862
  %vm864 = vweird.f32 %v858
  %vm865 = vweird.f32 %v859
  %vm866 = vmor %vm864, %vm865
  %v867 = vsel %vm866, %v859, %v863
  %v868 = vand.u32 2147483647, %v858
  %vm869 = vcmp.eq.f32.partialorder %v868, 8.507059e+37
  %v870 = vand.u32 %v858, 2147483648
  %v871 = vor.u32 1.1754944e-38, %v870
  %v872 = vsel %vm869, %v871, %v867
  %v873 = vmul.f32 1.0, %v872
  %v874 = vmul.f32 %v873, 2.0
  %v875 = vsub.f32 %v874, 1.0
  %v876 = vsel %vm37, %v875, %v873
  %v877 = vmul.f32 %v876, %v826
  %879 = vrot.lane.b32.xlu0 %v876, 64
  %v880 = vpop.permute.xlu0 %879
  %v882 = vmul.f32 %v876, %v880
  %884 = vrot.lane.b32.xlu0 %v882, 32
  %v885 = vpop.permute.xlu0 %884
  %v887 = vadd.f32 %v877, %v885
  %v888 = vtanh.pop %v887
  %890 = vrot.lane.b32.xlu0 %v888, 64
  %v891 = vpop.permute.xlu0 %890
  %v893 = vmul.f32 %v876, %v891
  %v894 = vld [vmem:[%s274] sm:$0xff]
  %v895 = vpack.c.bf16 %v893, %v893
  %897 = vrot.lane.b32.xlu0 %v895, 32
  %v898 = vpop.permute.xlu0 %897
  %v900 = vsel %vm78, %v898, 0
  %902 = vmatpush.bf16.msra.mxu0 0
  %903 = vmatpush.bf16.msra.mxu0 0
  %904 = vmatpush.bf16.msra.mxu0 0
  %905 = vmatpush.bf16.msra.mxu0 0
  %906 = vmatpush.bf16.msra.mxu0 0
  %907 = vmatpush.bf16.msra.mxu0 0
  %908 = vmatpush.bf16.msra.mxu0 %v777
  %909 = vmatpush.bf16.msra.mxu0 %v776
  %910 = vmatmul.bf16.gmra.mxu0 %v900
  %v911 = vpop.f32.mrf.mxu0
  %v912 = vadd.f32 0.0, %v911
  %v913 = vpop.f32.mrf.mxu0
  %914 = vdwg.mxu0
  %v915 = vadd.f32 %v894, %v912
  %v916 = vxor.u32 %v915, 2147483648
  %v917 = vmul.f32 %v916, 1.442695
  %v918 = vpow.pop %v917
  %v919 = vadd.f32 %v918, 1.0
  %v920 = vrcp.pop %v919
  %v921 = vmul.f32 %v919, %v920
  %v922 = vsub.f32 1.0, %v921
  %v923 = vmul.f32 %v920, %v922
  %v924 = vadd.f32 %v920, %v923
  %vm925 = vweird.f32 %v919
  %vm926 = vweird.f32 %v920
  %vm927 = vmor %vm925, %vm926
  %v928 = vsel %vm927, %v920, %v924
  %v929 = vand.u32 2147483647, %v919
  %vm930 = vcmp.eq.f32.partialorder %v929, 8.507059e+37
  %v931 = vand.u32 %v919, 2147483648
  %v932 = vor.u32 1.1754944e-38, %v931
  %v933 = vsel %vm930, %v932, %v928
  %v934 = vmul.f32 1.0, %v933
  %v935 = vmul.f32 %v934, 2.0
  %v936 = vsub.f32 %v935, 1.0
  %v937 = vsel %vm37, %v936, %v934
  %v938 = vmul.f32 %v937, %v887
  %940 = vrot.lane.b32.xlu0 %v937, 64
  %v941 = vpop.permute.xlu0 %940
  %v943 = vmul.f32 %v937, %v941
  %945 = vrot.lane.b32.xlu0 %v943, 32
  %v946 = vpop.permute.xlu0 %945
  %v948 = vadd.f32 %v938, %v946
  %v949 = vtanh.pop %v948
  %951 = vrot.lane.b32.xlu0 %v949, 64
  %v952 = vpop.permute.xlu0 %951
  %v954 = vmul.f32 %v937, %v952
  %v955 = vld [vmem:[%s342] sm:$0xff]
  %v956 = vpack.c.bf16 %v954, %v954
  %958 = vrot.lane.b32.xlu0 %v956, 32
  %v959 = vpop.permute.xlu0 %958
  %v961 = vsel %vm78, %v959, 0
  %963 = vmatpush.bf16.msra.mxu0 0
  %964 = vmatpush.bf16.msra.mxu0 0
  %965 = vmatpush.bf16.msra.mxu0 0
  %966 = vmatpush.bf16.msra.mxu0 0
  %967 = vmatpush.bf16.msra.mxu0 0
  %968 = vmatpush.bf16.msra.mxu0 0
  %969 = vmatpush.bf16.msra.mxu0 %v777
  %970 = vmatpush.bf16.msra.mxu0 %v776
  %971 = vmatmul.bf16.gmra.mxu0 %v961
  %v972 = vpop.f32.mrf.mxu0
  %v973 = vadd.f32 0.0, %v972
  %v974 = vpop.f32.mrf.mxu0
  %975 = vdwg.mxu0
  %v976 = vadd.f32 %v955, %v973
  %v977 = vxor.u32 %v976, 2147483648
  %v978 = vmul.f32 %v977, 1.442695
  %v979 = vpow.pop %v978
  %v980 = vadd.f32 %v979, 1.0
  %v981 = vrcp.pop %v980
  %v982 = vmul.f32 %v980, %v981
  %v983 = vsub.f32 1.0, %v982
  %v984 = vmul.f32 %v981, %v983
  %v985 = vadd.f32 %v981, %v984
  %vm986 = vweird.f32 %v980
  %vm987 = vweird.f32 %v981
  %vm988 = vmor %vm986, %vm987
  %v989 = vsel %vm988, %v981, %v985
  %v990 = vand.u32 2147483647, %v980
  %vm991 = vcmp.eq.f32.partialorder %v990, 8.507059e+37
  %v992 = vand.u32 %v980, 2147483648
  %v993 = vor.u32 1.1754944e-38, %v992
  %v994 = vsel %vm991, %v993, %v989
  %v995 = vmul.f32 1.0, %v994
  %v996 = vmul.f32 %v995, 2.0
  %v997 = vsub.f32 %v996, 1.0
  %v998 = vsel %vm37, %v997, %v995
  %v999 = vmul.f32 %v998, %v948
  %1001 = vrot.lane.b32.xlu0 %v998, 64
  %v1002 = vpop.permute.xlu0 %1001
  %v1004 = vmul.f32 %v998, %v1002
  %1006 = vrot.lane.b32.xlu0 %v1004, 32
  %v1007 = vpop.permute.xlu0 %1006
  %v1009 = vadd.f32 %v999, %v1007
  %v1010 = vtanh.pop %v1009
  %1012 = vrot.lane.b32.xlu0 %v1010, 64
  %v1013 = vpop.permute.xlu0 %1012
  %v1015 = vmul.f32 %v998, %v1013
  %v1016 = vld [vmem:[%s410] sm:$0xff]
  %v1017 = vpack.c.bf16 %v1015, %v1015
  %1019 = vrot.lane.b32.xlu0 %v1017, 32
  %v1020 = vpop.permute.xlu0 %1019
  %v1022 = vsel %vm78, %v1020, 0
  %1024 = vmatpush.bf16.msra.mxu0 0
  %1025 = vmatpush.bf16.msra.mxu0 0
  %1026 = vmatpush.bf16.msra.mxu0 0
  %1027 = vmatpush.bf16.msra.mxu0 0
  %1028 = vmatpush.bf16.msra.mxu0 0
  %1029 = vmatpush.bf16.msra.mxu0 0
  %1030 = vmatpush.bf16.msra.mxu0 %v777
  %1031 = vmatpush.bf16.msra.mxu0 %v776
  %1032 = vmatmul.bf16.gmra.mxu0 %v1022
  %v1033 = vpop.f32.mrf.mxu0
  %v1034 = vadd.f32 0.0, %v1033
  %v1035 = vpop.f32.mrf.mxu0
  %1036 = vdwg.mxu0
  %v1037 = vadd.f32 %v1016, %v1034
  %v1038 = vxor.u32 %v1037, 2147483648
  %v1039 = vmul.f32 %v1038, 1.442695
  %v1040 = vpow.pop %v1039
  %v1041 = vadd.f32 %v1040, 1.0
  %v1042 = vrcp.pop %v1041
  %v1043 = vmul.f32 %v1041, %v1042
  %v1044 = vsub.f32 1.0, %v1043
  %v1045 = vmul.f32 %v1042, %v1044
  %v1046 = vadd.f32 %v1042, %v1045
  %vm1047 = vweird.f32 %v1041
  %vm1048 = vweird.f32 %v1042
  %vm1049 = vmor %vm1047, %vm1048
  %v1050 = vsel %vm1049, %v1042, %v1046
  %v1051 = vand.u32 2147483647, %v1041
  %vm1052 = vcmp.eq.f32.partialorder %v1051, 8.507059e+37
  %v1053 = vand.u32 %v1041, 2147483648
  %v1054 = vor.u32 1.1754944e-38, %v1053
  %v1055 = vsel %vm1052, %v1054, %v1050
  %v1056 = vmul.f32 1.0, %v1055
  %v1057 = vmul.f32 %v1056, 2.0
  %v1058 = vsub.f32 %v1057, 1.0
  %v1059 = vsel %vm37, %v1058, %v1056
  %v1060 = vmul.f32 %v1059, %v1009
  %1062 = vrot.lane.b32.xlu0 %v1059, 64
  %v1063 = vpop.permute.xlu0 %1062
  %v1065 = vmul.f32 %v1059, %v1063
  %1067 = vrot.lane.b32.xlu0 %v1065, 32
  %v1068 = vpop.permute.xlu0 %1067
  %v1070 = vadd.f32 %v1060, %v1068
  %v1071 = vtanh.pop %v1070
  %1073 = vrot.lane.b32.xlu0 %v1071, 64
  %v1074 = vpop.permute.xlu0 %1073
  %v1076 = vmul.f32 %v1059, %v1074
  %v1077 = vld [vmem:[%s478] sm:$0xff]
  %v1078 = vpack.c.bf16 %v1076, %v1076
  %1080 = vrot.lane.b32.xlu0 %v1078, 32
  %v1081 = vpop.permute.xlu0 %1080
  %v1083 = vsel %vm78, %v1081, 0
  %1085 = vmatpush.bf16.msra.mxu0 0
  %1086 = vmatpush.bf16.msra.mxu0 0
  %1087 = vmatpush.bf16.msra.mxu0 0
  %1088 = vmatpush.bf16.msra.mxu0 0
  %1089 = vmatpush.bf16.msra.mxu0 0
  %1090 = vmatpush.bf16.msra.mxu0 0
  %1091 = vmatpush.bf16.msra.mxu0 %v777
  %1092 = vmatpush.bf16.msra.mxu0 %v776
  %1093 = vmatmul.bf16.gmra.mxu0 %v1083
  %v1094 = vpop.f32.mrf.mxu0
  %v1095 = vadd.f32 0.0, %v1094
  %v1096 = vpop.f32.mrf.mxu0
  %1097 = vdwg.mxu0
  %v1098 = vadd.f32 %v1077, %v1095
  %v1099 = vxor.u32 %v1098, 2147483648
  %v1100 = vmul.f32 %v1099, 1.442695
  %v1101 = vpow.pop %v1100
  %v1102 = vadd.f32 %v1101, 1.0
  %v1103 = vrcp.pop %v1102
  %v1104 = vmul.f32 %v1102, %v1103
  %v1105 = vsub.f32 1.0, %v1104
  %v1106 = vmul.f32 %v1103, %v1105
  %v1107 = vadd.f32 %v1103, %v1106
  %vm1108 = vweird.f32 %v1102
  %vm1109 = vweird.f32 %v1103
  %vm1110 = vmor %vm1108, %vm1109
  %v1111 = vsel %vm1110, %v1103, %v1107
  %v1112 = vand.u32 2147483647, %v1102
  %vm1113 = vcmp.eq.f32.partialorder %v1112, 8.507059e+37
  %v1114 = vand.u32 %v1102, 2147483648
  %v1115 = vor.u32 1.1754944e-38, %v1114
  %v1116 = vsel %vm1113, %v1115, %v1111
  %v1117 = vmul.f32 1.0, %v1116
  %v1118 = vmul.f32 %v1117, 2.0
  %v1119 = vsub.f32 %v1118, 1.0
  %v1120 = vsel %vm37, %v1119, %v1117
  %v1121 = vmul.f32 %v1120, %v1070
  %1123 = vrot.lane.b32.xlu0 %v1120, 64
  %v1124 = vpop.permute.xlu0 %1123
  %v1126 = vmul.f32 %v1120, %v1124
  %1128 = vrot.lane.b32.xlu0 %v1126, 32
  %v1129 = vpop.permute.xlu0 %1128
  %v1131 = vadd.f32 %v1121, %v1129
  %v1132 = vtanh.pop %v1131
  %1134 = vrot.lane.b32.xlu0 %v1132, 64
  %v1135 = vpop.permute.xlu0 %1134
  %v1137 = vmul.f32 %v1120, %v1135
  %v1138 = vld [vmem:[%s546] sm:$0xff]
  %v1139 = vpack.c.bf16 %v1137, %v1137
  %1141 = vrot.lane.b32.xlu0 %v1139, 32
  %v1142 = vpop.permute.xlu0 %1141
  %v1144 = vsel %vm78, %v1142, 0
  %1146 = vmatpush.bf16.msra.mxu0 0
  %1147 = vmatpush.bf16.msra.mxu0 0
  %1148 = vmatpush.bf16.msra.mxu0 0
  %1149 = vmatpush.bf16.msra.mxu0 0
  %1150 = vmatpush.bf16.msra.mxu0 0
  %1151 = vmatpush.bf16.msra.mxu0 0
  %1152 = vmatpush.bf16.msra.mxu0 %v777
  %1153 = vmatpush.bf16.msra.mxu0 %v776
  %1154 = vmatmul.bf16.gmra.mxu0 %v1144
  %v1155 = vpop.f32.mrf.mxu0
  %v1156 = vadd.f32 0.0, %v1155
  %v1157 = vpop.f32.mrf.mxu0
  %1158 = vdwg.mxu0
  %v1159 = vadd.f32 %v1138, %v1156
  %v1160 = vxor.u32 %v1159, 2147483648
  %v1161 = vmul.f32 %v1160, 1.442695
  %v1162 = vpow.pop %v1161
  %v1163 = vadd.f32 %v1162, 1.0
  %v1164 = vrcp.pop %v1163
  %v1165 = vmul.f32 %v1163, %v1164
  %v1166 = vsub.f32 1.0, %v1165
  %v1167 = vmul.f32 %v1164, %v1166
  %v1168 = vadd.f32 %v1164, %v1167
  %vm1169 = vweird.f32 %v1163
  %vm1170 = vweird.f32 %v1164
  %vm1171 = vmor %vm1169, %vm1170
  %v1172 = vsel %vm1171, %v1164, %v1168
  %v1173 = vand.u32 2147483647, %v1163
  %vm1174 = vcmp.eq.f32.partialorder %v1173, 8.507059e+37
  %v1175 = vand.u32 %v1163, 2147483648
  %v1176 = vor.u32 1.1754944e-38, %v1175
  %v1177 = vsel %vm1174, %v1176, %v1172
  %v1178 = vmul.f32 1.0, %v1177
  %v1179 = vmul.f32 %v1178, 2.0
  %v1180 = vsub.f32 %v1179, 1.0
  %v1181 = vsel %vm37, %v1180, %v1178
  %v1182 = vmul.f32 %v1181, %v1131
  %1184 = vrot.lane.b32.xlu0 %v1181, 64
  %v1185 = vpop.permute.xlu0 %1184
  %v1187 = vmul.f32 %v1181, %v1185
  %1189 = vrot.lane.b32.xlu0 %v1187, 32
  %v1190 = vpop.permute.xlu0 %1189
  %v1192 = vadd.f32 %v1182, %v1190
  %v1193 = vtanh.pop %v1192
  %1195 = vrot.lane.b32.xlu0 %v1193, 64
  %v1196 = vpop.permute.xlu0 %1195
  %v1198 = vmul.f32 %v1181, %v1196
  %v1199 = vld [vmem:[%s614] sm:$0xff]
  %v1200 = vpack.c.bf16 %v1198, %v1198
  %1202 = vrot.lane.b32.xlu0 %v1200, 32
  %v1203 = vpop.permute.xlu0 %1202
  %v1205 = vsel %vm78, %v1203, 0
  %1207 = vmatpush.bf16.msra.mxu0 0
  %1208 = vmatpush.bf16.msra.mxu0 0
  %1209 = vmatpush.bf16.msra.mxu0 0
  %1210 = vmatpush.bf16.msra.mxu0 0
  %1211 = vmatpush.bf16.msra.mxu0 0
  %1212 = vmatpush.bf16.msra.mxu0 0
  %1213 = vmatpush.bf16.msra.mxu0 %v777
  %1214 = vmatpush.bf16.msra.mxu0 %v776
  %1215 = vmatmul.bf16.gmra.mxu0 %v1205
  %v1216 = vpop.f32.mrf.mxu0
  %v1217 = vadd.f32 0.0, %v1216
  %v1218 = vpop.f32.mrf.mxu0
  %1219 = vdwg.mxu0
  %v1220 = vadd.f32 %v1199, %v1217
  %v1221 = vxor.u32 %v1220, 2147483648
  %v1222 = vmul.f32 %v1221, 1.442695
  %v1223 = vpow.pop %v1222
  %v1224 = vadd.f32 %v1223, 1.0
  %v1225 = vrcp.pop %v1224
  %v1226 = vmul.f32 %v1224, %v1225
  %v1227 = vsub.f32 1.0, %v1226
  %v1228 = vmul.f32 %v1225, %v1227
  %v1229 = vadd.f32 %v1225, %v1228
  %vm1230 = vweird.f32 %v1224
  %vm1231 = vweird.f32 %v1225
  %vm1232 = vmor %vm1230, %vm1231
  %v1233 = vsel %vm1232, %v1225, %v1229
  %v1234 = vand.u32 2147483647, %v1224
  %vm1235 = vcmp.eq.f32.partialorder %v1234, 8.507059e+37
  %v1236 = vand.u32 %v1224, 2147483648
  %v1237 = vor.u32 1.1754944e-38, %v1236
  %v1238 = vsel %vm1235, %v1237, %v1233
  %v1239 = vmul.f32 1.0, %v1238
  %v1240 = vmul.f32 %v1239, 2.0
  %v1241 = vsub.f32 %v1240, 1.0
  %v1242 = vsel %vm37, %v1241, %v1239
  %v1243 = vmul.f32 %v1242, %v1192
  %1245 = vrot.lane.b32.xlu0 %v1242, 64
  %v1246 = vpop.permute.xlu0 %1245
  %v1248 = vmul.f32 %v1242, %v1246
  %1250 = vrot.lane.b32.xlu0 %v1248, 32
  %v1251 = vpop.permute.xlu0 %1250
  %v1253 = vadd.f32 %v1243, %v1251
  %v1254 = vtanh.pop %v1253
  %1256 = vrot.lane.b32.xlu0 %v1254, 64
  %v1257 = vpop.permute.xlu0 %1256
  %v1259 = vmul.f32 %v1242, %v1257
  %v1260 = vld [vmem:[%s8] sm:$0x1]
  %v1262 = vperm.slane %v1260, 0
  %v1264 = vtanh.pop %v675
  %v1265 = vpack.c.bf16 %v1264, %v1264
  %v1266 = vld [vmem:[%s7] sm:$0xf]
  %v1267 = vld [vmem:[%s7 + $0x4] sm:$0xf]
  %v1268 = vld [vmem:[%s7 + $0x8] sm:$0xf]
  %v1269 = vld [vmem:[%s7 + $0xc] sm:$0xf]
  %1271 = vrot.lane.b32.xlu0 %v1265, 32
  %v1272 = vpop.permute.xlu0 %1271
  %v1277 = vunpack.c.l.b16 %v1266
  %v1278 = vunpack.c.l.b16 %v1267
  %v1279 = vunpack.c.l.b16 %v1268
  %v1280 = vunpack.c.l.b16 %v1269
  %v1281 = vpack.c.b16 %v1278, %v1277
  %v1282 = vpack.c.b16 %v1280, %v1279
  %v1286 = vsel %vm78, %v1272, 0
  %1288 = vmatpush.bf16.msra.mxu0 0
  %1289 = vmatpush.bf16.msra.mxu0 0
  %1290 = vmatpush.bf16.msra.mxu0 0
  %1291 = vmatpush.bf16.msra.mxu0 0
  %1292 = vmatpush.bf16.msra.mxu0 0
  %1293 = vmatpush.bf16.msra.mxu0 0
  %1294 = vmatpush.bf16.msra.mxu0 %v1282
  %1295 = vmatpush.bf16.msra.mxu0 %v1281
  %1296 = vmatmul.bf16.gmra.mxu0 %v1286
  %v1297 = vpop.f32.mrf.mxu0
  %v1298 = vadd.f32 0.0, %v1297
  %v1299 = vpop.f32.mrf.mxu0
  %1300 = vdwg.mxu0
  %v1301 = vadd.f32 %v1262, %v1298
  %v1302 = vpack.c.bf16 %v670, %v670
  %v1303 = vld [vmem:[%s7 + $0x10] sm:$0xf]
  %v1304 = vld [vmem:[%s7 + $0x14] sm:$0xf]
  %v1305 = vld [vmem:[%s7 + $0x18] sm:$0xf]
  %v1306 = vld [vmem:[%s7 + $0x1c] sm:$0xf]
  %1308 = vrot.lane.b32.xlu0 %v1302, 96
  %v1309 = vpop.permute.xlu0 %1308
  %v1314 = vunpack.c.l.b16 %v1303
  %v1315 = vunpack.c.l.b16 %v1304
  %v1316 = vunpack.c.l.b16 %v1305
  %v1317 = vunpack.c.l.b16 %v1306
  %v1318 = vpack.c.b16 %v1315, %v1314
  %v1319 = vpack.c.b16 %v1317, %v1316
  %v1323 = vsel %vm78, %v1309, 0
  %1325 = vmatpush.bf16.msra.mxu0 0
  %1326 = vmatpush.bf16.msra.mxu0 0
  %1327 = vmatpush.bf16.msra.mxu0 0
  %1328 = vmatpush.bf16.msra.mxu0 0
  %1329 = vmatpush.bf16.msra.mxu0 0
  %1330 = vmatpush.bf16.msra.mxu0 0
  %1331 = vmatpush.bf16.msra.mxu0 %v1319
  %1332 = vmatpush.bf16.msra.mxu0 %v1318
  %1333 = vmatmul.bf16.gmra.mxu0 %v1323
  %v1334 = vpop.f32.mrf.mxu0
  %v1335 = vadd.f32 0.0, %v1334
  %v1336 = vpop.f32.mrf.mxu0
  %1337 = vdwg.mxu0
  %v1338 = vadd.f32 %v1301, %v1335
  %v1339 = vtanh.pop %v1259
  %v1340 = vpack.c.bf16 %v1339, %v1339
  %v1341 = vld [vmem:[%s7 + $0x20] sm:$0xf]
  %v1342 = vld [vmem:[%s7 + $0x24] sm:$0xf]
  %v1343 = vld [vmem:[%s7 + $0x28] sm:$0xf]
  %v1344 = vld [vmem:[%s7 + $0x2c] sm:$0xf]
  %1346 = vrot.lane.b32.xlu0 %v1340, 32
  %v1347 = vpop.permute.xlu0 %1346
  %v1352 = vunpack.c.l.b16 %v1341
  %v1353 = vunpack.c.l.b16 %v1342
  %v1354 = vunpack.c.l.b16 %v1343
  %v1355 = vunpack.c.l.b16 %v1344
  %v1356 = vpack.c.b16 %v1353, %v1352
  %v1357 = vpack.c.b16 %v1355, %v1354
  %v1361 = vsel %vm78, %v1347, 0
  %1363 = vmatpush.bf16.msra.mxu0 0
  %1364 = vmatpush.bf16.msra.mxu0 0
  %1365 = vmatpush.bf16.msra.mxu0 0
  %1366 = vmatpush.bf16.msra.mxu0 0
  %1367 = vmatpush.bf16.msra.mxu0 0
  %1368 = vmatpush.bf16.msra.mxu0 0
  %1369 = vmatpush.bf16.msra.mxu0 %v1357
  %1370 = vmatpush.bf16.msra.mxu0 %v1356
  %1371 = vmatmul.bf16.gmra.mxu0 %v1361
  %v1372 = vpop.f32.mrf.mxu0
  %v1373 = vadd.f32 0.0, %v1372
  %v1374 = vpop.f32.mrf.mxu0
  %1375 = vdwg.mxu0
  %v1376 = vadd.f32 %v1338, %v1373
  %v1377 = vpack.c.bf16 %v1254, %v1254
  %v1378 = vld [vmem:[%s7 + $0x30] sm:$0xf]
  %v1379 = vld [vmem:[%s7 + $0x34] sm:$0xf]
  %v1380 = vld [vmem:[%s7 + $0x38] sm:$0xf]
  %v1381 = vld [vmem:[%s7 + $0x3c] sm:$0xf]
  %1383 = vrot.lane.b32.xlu0 %v1377, 96
  %v1384 = vpop.permute.xlu0 %1383
  %v1389 = vunpack.c.l.b16 %v1378
  %v1390 = vunpack.c.l.b16 %v1379
  %v1391 = vunpack.c.l.b16 %v1380
  %v1392 = vunpack.c.l.b16 %v1381
  %v1393 = vpack.c.b16 %v1390, %v1389
  %v1394 = vpack.c.b16 %v1392, %v1391
  %v1398 = vsel %vm78, %v1384, 0
  %1400 = vmatpush.bf16.msra.mxu0 0
  %1401 = vmatpush.bf16.msra.mxu0 0
  %1402 = vmatpush.bf16.msra.mxu0 0
  %1403 = vmatpush.bf16.msra.mxu0 0
  %1404 = vmatpush.bf16.msra.mxu0 0
  %1405 = vmatpush.bf16.msra.mxu0 0
  %1406 = vmatpush.bf16.msra.mxu0 %v1394
  %1407 = vmatpush.bf16.msra.mxu0 %v1393
  %1408 = vmatmul.bf16.gmra.mxu0 %v1398
  %v1409 = vpop.f32.mrf.mxu0
  %v1410 = vadd.f32 0.0, %v1409
  %v1411 = vpop.f32.mrf.mxu0
  %1412 = vdwg.mxu0
  %v1413 = vadd.f32 %v1376, %v1410
  %1414 = vst.msk [vmem:[%s9] sm:$0xff] %vm78, %v1413
  // Predicated region
  $region38: #{qst_encoder_forward.1} parent=0 // pred_check
    _
  $region39: #{qst_encoder_forward.1} parent=0 // pred_check_branch
    %1416 = sbr.rel (0) target = $region41
  $region40: #{qst_encoder_forward.1} parent=0 // pred_region
    _
  $region41: #{qst_encoder_forward.1} parent=0 // pred_fallthru
    _
  // Predicated region
  $region42: #{qst_encoder_forward.1} parent=0 // pred_check
    _
  $region43: #{qst_encoder_forward.1} parent=0 // pred_check_branch
    %1418 = sbr.rel (0) target = $region45
  $region44: #{qst_encoder_forward.1} parent=0 // pred_region
    _
  $region45: #{qst_encoder_forward.1} parent=0 // pred_fallthru
    _

</llo_original>
